<compile_context>
chip_gen: v7x
topology: tpu7x:2x2x1
jax: 0.10.0
libtpu: 0.0.40
codegen_flags: <defaults>
</compile_context>

<pallas_src>
import functools

import jax
import jax.numpy as jnp
from jax.experimental import pallas as pl
from jax.experimental.pallas import tpu as pltpu


def _value_func_kernel(s_ref, a_ref, w1_ref, b1_ref, w2_ref, b2_ref,
                       w3t_ref, b3_ref, o_ref):
    """Fused 3-layer MLP on one batch tile.

    s_ref  : (TB, 4)    a_ref : (TB, 1)
    w1_ref : (5, H)     b1_ref: (1, H)
    w2_ref : (H, H2)    b2_ref: (1, H2)     (w2 may be bf16)
    w3t_ref: (1, H2)    b3_ref: (1, 1)
    o_ref  : (TB, 1)
    """
    s = s_ref[...]                                   # (TB, 4)
    a = a_ref[...]                                   # (TB, 1)
    w1 = w1_ref[...]                                 # (5, H)

    # ---- Layer 1: K=5 contraction as 5 VPU broadcast-FMAs (MXU would be ~96% padding).
    h1 = a * w1[4:5, :] + b1_ref[...]                # (TB, H)
    for k in range(4):                               # static unroll
        h1 = h1 + s[:, k:k + 1] * w1[k:k + 1, :]
    h1 = jnp.maximum(h1, 0.0)

    # ---- Layer 2: the only well-shaped contraction -> MXU, f32 accumulation.
    h2 = jnp.dot(h1.astype(w2_ref.dtype), w2_ref[...],
                 preferred_element_type=jnp.float32)
    h2 = jnp.maximum(h2 + b2_ref[...], 0.0)          # (TB, H2)

    # ---- Layer 3: N=1 -> elementwise multiply + lane reduction (XLU), not MXU.
    out = jnp.sum(h2 * w3t_ref[...], axis=-1, keepdims=True) + b3_ref[...]
    o_ref[...] = out.astype(o_ref.dtype)


def _pick_batch_tile(batch):
    if batch <= 1024:
        # Whole (padded) batch in a single block: no grid/pipeline overhead.
        return max(8, ((batch + 7) // 8) * 8)
    # Large batch: 1024-row tiles (multiple of 256) -> >= 2 parallel tiles for
    # v7x megacore sharding while keeping the per-step VMEM footprint tiny.
    return 1024


@functools.partial(jax.jit, static_argnames=("batch_tile", "use_bf16_matmul"))
def value_func_forward(s, a, params, *, batch_tile=None, use_bf16_matmul=False):
    """Pallas forward pass of ValueFunc.

    s: (B, 4) float32, a: (B, 1) float32  ->  (B, 1) float32
    use_bf16_matmul: run the H x H/2 contraction with bf16 operands
    (v6e/v7x bf16-native MXU) while keeping f32 accumulation.
    """
    b_sz = s.shape[0]
    w1, b1, w2, b2, w3, b3 = params
    hidden = w1.shape[1]
    hidden2 = w2.shape[1]

    if batch_tile is None:
        batch_tile = _pick_batch_tile(b_sz)
    assert batch_tile % 8 == 0, "batch_tile must be a multiple of 8 sublanes"

    # Pad batch to a multiple of the tile; padded rows are sliced off below.
    padded_b = ((b_sz + batch_tile - 1) // batch_tile) * batch_tile
    pad = padded_b - b_sz
    if pad:
        s = jnp.pad(s, ((0, pad), (0, 0)))
        a = jnp.pad(a, ((0, pad), (0, 0)))

    w2_in = w2.astype(jnp.bfloat16) if use_bf16_matmul else w2
    w3t = w3.reshape(1, hidden2)                 # (H2, 1) -> (1, H2), lane-major

    grid = (padded_b // batch_tile,)
    full = lambda i: (0, 0)
    in_specs = [
        pl.BlockSpec((batch_tile, 4), lambda i: (i, 0)),   # s tile
        pl.BlockSpec((batch_tile, 1), lambda i: (i, 0)),   # a tile
        pl.BlockSpec((5, hidden), full),                   # w1   (resident)
        pl.BlockSpec((1, hidden), full),                   # b1
        pl.BlockSpec((hidden, hidden2), full),             # w2
        pl.BlockSpec((1, hidden2), full),                  # b2
        pl.BlockSpec((1, hidden2), full),                  # w3^T
        pl.BlockSpec((1, 1), full),                        # b3
    ]
    out_spec = pl.BlockSpec((batch_tile, 1), lambda i: (i, 0))

    param_bytes = sum(int(p.size) * p.dtype.itemsize
                      for p in (w1, b1, w2_in, b2, w3t, b3))
    cost = pl.CostEstimate(
        flops=2 * padded_b * (5 * hidden + hidden * hidden2 + hidden2),
        transcendentals=0,
        bytes_accessed=4 * padded_b * (4 + 1 + 1) + param_bytes,
    )

    out = pl.pallas_call(
        _value_func_kernel,
        out_shape=jax.ShapeDtypeStruct((padded_b, 1), jnp.float32),
        grid_spec=pltpu.PrefetchScalarGridSpec(
            num_scalar_prefetch=0,
            grid=grid,
            in_specs=in_specs,
            out_specs=out_spec,
        ),
        compiler_params=pltpu.CompilerParams(
            dimension_semantics=("parallel",),   # batch tiles shard across TCs (v7x)
            vmem_limit_bytes=32 * 1024 * 1024,   # explicit; safe on v5e/v6e/v7x
        ),
        cost_estimate=cost,
    )(s, a, w1, b1, w2_in, b2, w3t, b3)

    return out[:b_sz] if pad else out


def init_value_func_params(key, hidden_features=128):
    """Deterministic init mirroring nn.Linear's U(-1/sqrt(fan_in), 1/sqrt(fan_in)).

    Weights stored as (in_features, out_features); biases as (1, out)."""
    h = hidden_features
    h2 = hidden_features // 2
    dims = [(5, h), (h, h2), (h2, 1)]
    params = []
    for (fan_in, fan_out) in dims:
        key, kw, kb = jax.random.split(key, 3)
        bound = 1.0 / (fan_in ** 0.5)
        w = jax.random.uniform(kw, (fan_in, fan_out), jnp.float32,
                               minval=-bound, maxval=bound)
        b = jax.random.uniform(kb, (1, fan_out), jnp.float32,
                               minval=-bound, maxval=bound)
        params += [w, b]
    return tuple(params)


def _reference_forward(s, a, params, use_bf16_matmul=False):
    """Pure-JAX reference for correctness checking."""
    w1, b1, w2, b2, w3, b3 = params
    hi = jax.lax.Precision.HIGHEST
    x = jnp.concatenate([s, a], axis=1)
    h1 = jnp.maximum(jnp.dot(x, w1, precision=hi) + b1, 0.0)
    if use_bf16_matmul:
        h2 = jnp.dot(h1.astype(jnp.bfloat16), w2.astype(jnp.bfloat16),
                     preferred_element_type=jnp.float32)
    else:
        h2 = jnp.dot(h1, w2, precision=hi)
    h2 = jnp.maximum(h2 + b2, 0.0)
    return jnp.dot(h2, w3, precision=hi) + b3


if __name__ == "__main__":
    key = jax.random.PRNGKey(0)
    k_params, k_s, k_a = jax.random.split(key, 3)

    hidden_features = 128         # module default
    batch = 256                   # small, fits a single whole-batch block

    params = init_value_func_params(k_params, hidden_features)
    s = jax.random.normal(k_s, (batch, 4), jnp.float32)   # cart-pole state
    a = jax.random.normal(k_a, (batch, 1), jnp.float32)   # scalar action

    # f32 path (default): exact match to the PyTorch-style reference.
    out = jax.block_until_ready(value_func_forward(s, a, params))
    ref = _reference_forward(s, a, params)
    assert out.shape == (batch, 1)
    assert jnp.allclose(out, ref, atol=1e-4, rtol=1e-4), "f32 mismatch vs reference"

    # Non-divisible batch exercises the pad-and-slice path.
    out_odd = jax.block_until_ready(value_func_forward(s[:37], a[:37], params))
    ref_odd = _reference_forward(s[:37], a[:37], params)
    assert out_odd.shape == (37, 1)
    assert jnp.allclose(out_odd, ref_odd, atol=1e-4, rtol=1e-4), "odd-batch mismatch"

    # bf16-MXU path (v6e/v7x fast path), checked against a matching bf16 reference.
    out_bf = jax.block_until_ready(
        value_func_forward(s, a, params, use_bf16_matmul=True))
    ref_bf = _reference_forward(s, a, params, use_bf16_matmul=True)
    assert jnp.allclose(out_bf, ref_bf, atol=1e-2, rtol=1e-2), "bf16 mismatch"

    print("KERNEL_OK")
</pallas_src>

<mosaic_0001>
module attributes {stable_mosaic.version = 11 : i64} {
  func.func @_value_func_kernel(%arg0: i32, %arg1: memref<256x4xf32, #tpu.memory_space<vmem>>, %arg2: memref<256x1xf32, #tpu.memory_space<vmem>>, %arg3: memref<5x128xf32, #tpu.memory_space<vmem>>, %arg4: memref<1x128xf32, #tpu.memory_space<vmem>>, %arg5: memref<128x64xf32, #tpu.memory_space<vmem>>, %arg6: memref<1x64xf32, #tpu.memory_space<vmem>>, %arg7: memref<1x64xf32, #tpu.memory_space<vmem>>, %arg8: memref<1x1xf32, #tpu.memory_space<vmem>>, %arg9: memref<256x1xf32, #tpu.memory_space<vmem>>) attributes {dimension_semantics = [#tpu.dimension_semantics<parallel>], iteration_bounds = array<i64: 1>, scalar_prefetch = 0 : i64, scratch_operands = 0 : i64, tpu.core_type = #tpu.core_type<tc>, window_params = [{transform_indices = @transform_0, window_bounds = array<i64: 256, 4>}, {transform_indices = @transform_1, window_bounds = array<i64: 256, 1>}, {pipeline_mode = #tpu.pipeline_mode<synchronous>, transform_indices = @transform_2, window_bounds = array<i64: 5, 128>}, {pipeline_mode = #tpu.pipeline_mode<synchronous>, transform_indices = @transform_3, window_bounds = array<i64: 1, 128>}, {pipeline_mode = #tpu.pipeline_mode<synchronous>, transform_indices = @transform_4, window_bounds = array<i64: 128, 64>}, {pipeline_mode = #tpu.pipeline_mode<synchronous>, transform_indices = @transform_5, window_bounds = array<i64: 1, 64>}, {pipeline_mode = #tpu.pipeline_mode<synchronous>, transform_indices = @transform_6, window_bounds = array<i64: 1, 64>}, {pipeline_mode = #tpu.pipeline_mode<synchronous>, transform_indices = @transform_7, window_bounds = array<i64: 1, 1>}, {transform_indices = @transform_8, window_bounds = array<i64: 256, 1>}]} {
    %c0 = arith.constant 0 : index
    %c0_0 = arith.constant 0 : index
    %0 = vector.load %arg1[%c0, %c0_0] : memref<256x4xf32, #tpu.memory_space<vmem>>, vector<256x4xf32>
    %c0_1 = arith.constant 0 : index
    %c0_2 = arith.constant 0 : index
    %1 = vector.load %arg2[%c0_1, %c0_2] : memref<256x1xf32, #tpu.memory_space<vmem>>, vector<256x1xf32>
    %c0_3 = arith.constant 0 : index
    %c0_4 = arith.constant 0 : index
    %2 = vector.load %arg3[%c0_3, %c0_4] : memref<5x128xf32, #tpu.memory_space<vmem>>, vector<5x128xf32>
    %3 = vector.extract_strided_slice %2 {offsets = [4, 0], sizes = [1, 128], strides = [1, 1]} : vector<5x128xf32> to vector<1x128xf32>
    %4 = vector.broadcast %1 : vector<256x1xf32> to vector<256x128xf32>
    %5 = vector.broadcast %3 : vector<1x128xf32> to vector<256x128xf32>
    %6 = arith.mulf %4, %5 : vector<256x128xf32>
    %c0_5 = arith.constant 0 : index
    %c0_6 = arith.constant 0 : index
    %7 = vector.load %arg4[%c0_5, %c0_6] : memref<1x128xf32, #tpu.memory_space<vmem>>, vector<1x128xf32>
    %8 = vector.broadcast %7 : vector<1x128xf32> to vector<256x128xf32>
    %9 = arith.addf %6, %8 : vector<256x128xf32>
    %10 = vector.extract_strided_slice %0 {offsets = [0, 0], sizes = [256, 1], strides = [1, 1]} : vector<256x4xf32> to vector<256x1xf32>
    %11 = vector.extract_strided_slice %2 {offsets = [0, 0], sizes = [1, 128], strides = [1, 1]} : vector<5x128xf32> to vector<1x128xf32>
    %12 = vector.broadcast %10 : vector<256x1xf32> to vector<256x128xf32>
    %13 = vector.broadcast %11 : vector<1x128xf32> to vector<256x128xf32>
    %14 = arith.mulf %12, %13 : vector<256x128xf32>
    %15 = arith.addf %9, %14 : vector<256x128xf32>
    %16 = vector.extract_strided_slice %0 {offsets = [0, 1], sizes = [256, 1], strides = [1, 1]} : vector<256x4xf32> to vector<256x1xf32>
    %17 = vector.extract_strided_slice %2 {offsets = [1, 0], sizes = [1, 128], strides = [1, 1]} : vector<5x128xf32> to vector<1x128xf32>
    %18 = vector.broadcast %16 : vector<256x1xf32> to vector<256x128xf32>
    %19 = vector.broadcast %17 : vector<1x128xf32> to vector<256x128xf32>
    %20 = arith.mulf %18, %19 : vector<256x128xf32>
    %21 = arith.addf %15, %20 : vector<256x128xf32>
    %22 = vector.extract_strided_slice %0 {offsets = [0, 2], sizes = [256, 1], strides = [1, 1]} : vector<256x4xf32> to vector<256x1xf32>
    %23 = vector.extract_strided_slice %2 {offsets = [2, 0], sizes = [1, 128], strides = [1, 1]} : vector<5x128xf32> to vector<1x128xf32>
    %24 = vector.broadcast %22 : vector<256x1xf32> to vector<256x128xf32>
    %25 = vector.broadcast %23 : vector<1x128xf32> to vector<256x128xf32>
    %26 = arith.mulf %24, %25 : vector<256x128xf32>
    %27 = arith.addf %21, %26 : vector<256x128xf32>
    %28 = vector.extract_strided_slice %0 {offsets = [0, 3], sizes = [256, 1], strides = [1, 1]} : vector<256x4xf32> to vector<256x1xf32>
    %29 = vector.extract_strided_slice %2 {offsets = [3, 0], sizes = [1, 128], strides = [1, 1]} : vector<5x128xf32> to vector<1x128xf32>
    %30 = vector.broadcast %28 : vector<256x1xf32> to vector<256x128xf32>
    %31 = vector.broadcast %29 : vector<1x128xf32> to vector<256x128xf32>
    %32 = arith.mulf %30, %31 : vector<256x128xf32>
    %33 = arith.addf %27, %32 : vector<256x128xf32>
    %cst = arith.constant 0.000000e+00 : f32
    %34 = vector.broadcast %cst : f32 to vector<256x128xf32>
    %35 = arith.maximumf %33, %34 : vector<256x128xf32>
    %c0_7 = arith.constant 0 : index
    %c0_8 = arith.constant 0 : index
    %36 = vector.load %arg5[%c0_7, %c0_8] : memref<128x64xf32, #tpu.memory_space<vmem>>, vector<128x64xf32>
    %cst_9 = arith.constant dense<0.000000e+00> : vector<256x64xf32>
    %37 = tpu.matmul %35, %36, %cst_9 {dimension_numbers = #tpu.dot_dimension_numbers<[1], [0], [0], [1], [0, 0, 1, 1], [], []>} : vector<256x128xf32>, vector<128x64xf32>, vector<256x64xf32> -> vector<256x64xf32>
    %c0_10 = arith.constant 0 : index
    %c0_11 = arith.constant 0 : index
    %38 = vector.load %arg6[%c0_10, %c0_11] : memref<1x64xf32, #tpu.memory_space<vmem>>, vector<1x64xf32>
    %39 = vector.broadcast %38 : vector<1x64xf32> to vector<256x64xf32>
    %40 = arith.addf %37, %39 : vector<256x64xf32>
    %cst_12 = arith.constant 0.000000e+00 : f32
    %41 = vector.broadcast %cst_12 : f32 to vector<256x64xf32>
    %42 = arith.maximumf %40, %41 : vector<256x64xf32>
    %c0_13 = arith.constant 0 : index
    %c0_14 = arith.constant 0 : index
    %43 = vector.load %arg7[%c0_13, %c0_14] : memref<1x64xf32, #tpu.memory_space<vmem>>, vector<1x64xf32>
    %44 = vector.broadcast %43 : vector<1x64xf32> to vector<256x64xf32>
    %45 = arith.mulf %42, %44 : vector<256x64xf32>
    %cst_15 = arith.constant dense<0.000000e+00> : vector<256xf32>
    %46 = vector.multi_reduction <add>, %45, %cst_15 [1] : vector<256x64xf32> to vector<256xf32>
    %47 = vector.shape_cast %46 : vector<256xf32> to vector<256x1xf32>
    %c0_16 = arith.constant 0 : index
    %c0_17 = arith.constant 0 : index
    %48 = vector.load %arg8[%c0_16, %c0_17] : memref<1x1xf32, #tpu.memory_space<vmem>>, vector<1x1xf32>
    %49 = vector.broadcast %48 : vector<1x1xf32> to vector<256x1xf32>
    %50 = arith.addf %47, %49 : vector<256x1xf32>
    %c0_18 = arith.constant 0 : index
    %c0_19 = arith.constant 0 : index
    %51 = vector.load %arg9[%c0_18, %c0_19] : memref<256x1xf32, #tpu.memory_space<vmem>>, vector<256x1xf32>
    tpu.vector_store %arg9[%c0_18, %c0_19], %50 {strides = array<i32>} : memref<256x1xf32, #tpu.memory_space<vmem>>, vector<256x1xf32>,
    return
  }
  func.func @transform_0(%arg0: i32) -> (i32, i32) {
    %c0_i32 = arith.constant 0 : i32
    %c0_i32_0 = arith.constant 0 : i32
    return %arg0, %c0_i32 : i32, i32
  }
  func.func @transform_1(%arg0: i32) -> (i32, i32) {
    %c0_i32 = arith.constant 0 : i32
    %c0_i32_0 = arith.constant 0 : i32
    return %arg0, %c0_i32 : i32, i32
  }
  func.func @transform_2(%arg0: i32) -> (i32, i32) {
    %c0_i32 = arith.constant 0 : i32
    %c0_i32_0 = arith.constant 0 : i32
    %c0_i32_1 = arith.constant 0 : i32
    return %c0_i32, %c0_i32_0 : i32, i32
  }
  func.func @transform_3(%arg0: i32) -> (i32, i32) {
    %c0_i32 = arith.constant 0 : i32
    %c0_i32_0 = arith.constant 0 : i32
    %c0_i32_1 = arith.constant 0 : i32
    return %c0_i32, %c0_i32_0 : i32, i32
  }
  func.func @transform_4(%arg0: i32) -> (i32, i32) {
    %c0_i32 = arith.constant 0 : i32
    %c0_i32_0 = arith.constant 0 : i32
    %c0_i32_1 = arith.constant 0 : i32
    return %c0_i32, %c0_i32_0 : i32, i32
  }
  func.func @transform_5(%arg0: i32) -> (i32, i32) {
    %c0_i32 = arith.constant 0 : i32
    %c0_i32_0 = arith.constant 0 : i32
    %c0_i32_1 = arith.constant 0 : i32
    return %c0_i32, %c0_i32_0 : i32, i32
  }
  func.func @transform_6(%arg0: i32) -> (i32, i32) {
    %c0_i32 = arith.constant 0 : i32
    %c0_i32_0 = arith.constant 0 : i32
    %c0_i32_1 = arith.constant 0 : i32
    return %c0_i32, %c0_i32_0 : i32, i32
  }
  func.func @transform_7(%arg0: i32) -> (i32, i32) {
    %c0_i32 = arith.constant 0 : i32
    %c0_i32_0 = arith.constant 0 : i32
    %c0_i32_1 = arith.constant 0 : i32
    return %c0_i32, %c0_i32_0 : i32, i32
  }
  func.func @transform_8(%arg0: i32) -> (i32, i32) {
    %c0_i32 = arith.constant 0 : i32
    %c0_i32_0 = arith.constant 0 : i32
    return %arg0, %c0_i32 : i32, i32
  }
}

</mosaic_0001>

<llo_original>
// kernel: value_func_forward.1
$region0: #{value_func_forward.1}
  #allocation0 [shape = 'u32[]', space=smem, size = 0x4, offset = 0x4, fixed_abs, tag = 'smem constant byte address 0x4 - core index']
  #allocation1 [shape = 'u32[144,128]{1,0:T(1,128)}', space=vmem, size = 0x12000, scoped, tag = 'internal scratch']
  #allocation2 [shape = 'f32[1,1]{1,0:T(1,128)S(1)}', space=vmem, size = 0x200, scoped, tag = 'scoped memory for value_func_forward.1']
  %s0 = inlined_call_operand.vmem [shape: f32[256,4], index: 0, kind: input, shape index: {}]
  %s1 = inlined_call_operand.vmem [shape: f32[256,1], index: 1, kind: input, shape index: {}]
  %s2 = inlined_call_operand.vmem [shape: f32[5,128], index: 2, kind: input, shape index: {}]
  %s3 = inlined_call_operand.vmem [shape: f32[1,128], index: 3, kind: input, shape index: {}]
  %s4 = inlined_call_operand.vmem [shape: f32[128,64], index: 4, kind: input, shape index: {}]
  %s5 = inlined_call_operand.vmem [shape: f32[1,64], index: 5, kind: input, shape index: {}]
  %s6 = inlined_call_operand.vmem [shape: f32[1,64], index: 6, kind: input, shape index: {}]
  %s7 = inlined_call_operand.<no memory space> [shape: f32[1,1], index: 7, kind: input, shape index: {}]
  %s8 = inlined_call_operand.vmem [shape: f32[256,1], index: 8, kind: output, shape index: {}]
  %s9 = sld [smem:[#allocation0]]
  $region42: #{value_func_forward.1} parent=0
    _
  %s11 = ssub.s32 1, %s9
  %s12 = scalar_select 0, %s11, %s9
  %v13 = vstv %s7
  %14 = vst [vmem:[#allocation2] sm:$0x1] %v13
  // Predicated region
  $region2: #{value_func_forward.1} parent=0 // pred_check
    _
  $region3: #{value_func_forward.1} parent=0 // pred_check_branch
    %16 = sbr.rel (0) target = $region5
  $region4: #{value_func_forward.1} parent=0 // pred_region
    _
  $region5: #{value_func_forward.1} parent=0 // pred_fallthru
    _
  // Predicated region
  $region6: #{value_func_forward.1} parent=0 // pred_check
    _
  $region7: #{value_func_forward.1} parent=0 // pred_check_branch
    %18 = sbr.rel (0) target = $region9
  $region8: #{value_func_forward.1} parent=0 // pred_region
    _
  $region9: #{value_func_forward.1} parent=0 // pred_fallthru
    _
  // Predicated region
  $region10: #{value_func_forward.1} parent=0 // pred_check
    _
  $region11: #{value_func_forward.1} parent=0 // pred_check_branch
    %20 = sbr.rel (0) target = $region13
  $region12: #{value_func_forward.1} parent=0 // pred_region
    _
  $region13: #{value_func_forward.1} parent=0 // pred_fallthru
    _
  // Predicated region
  $region14: #{value_func_forward.1} parent=0 // pred_check
    _
  $region15: #{value_func_forward.1} parent=0 // pred_check_branch
    %22 = sbr.rel (0) target = $region17
  $region16: #{value_func_forward.1} parent=0 // pred_region
    _
  $region17: #{value_func_forward.1} parent=0 // pred_fallthru
    _
  // Predicated region
  $region18: #{value_func_forward.1} parent=0 // pred_check
    _
  $region19: #{value_func_forward.1} parent=0 // pred_check_branch
    %24 = sbr.rel (0) target = $region21
  $region20: #{value_func_forward.1} parent=0 // pred_region
    _
  $region21: #{value_func_forward.1} parent=0 // pred_fallthru
    _
  // Predicated region
  $region22: #{value_func_forward.1} parent=0 // pred_check
    _
  $region23: #{value_func_forward.1} parent=0 // pred_check_branch
    %26 = sbr.rel (0) target = $region25
  $region24: #{value_func_forward.1} parent=0 // pred_region
    _
  $region25: #{value_func_forward.1} parent=0 // pred_fallthru
    _
  // Predicated region
  $region26: #{value_func_forward.1} parent=0 // pred_check
    _
  $region27: #{value_func_forward.1} parent=0 // pred_check_branch
    %28 = sbr.rel (0) target = $region29
  $region28: #{value_func_forward.1} parent=0 // pred_region
    _
  $region29: #{value_func_forward.1} parent=0 // pred_fallthru
    _
  // Predicated region
  $region30: #{value_func_forward.1} parent=0 // pred_check
    _
  $region31: #{value_func_forward.1} parent=0 // pred_check_branch
    %30 = sbr.rel (0) target = $region33
  $region32: #{value_func_forward.1} parent=0 // pred_region
    _
  $region33: #{value_func_forward.1} parent=0 // pred_fallthru
    _
  %v31 = vld [vmem:[%s0] sm:$0xff]
  %v32 = vld [vmem:[%s0 + $0x8] sm:$0xff]
  %v33 = vld [vmem:[%s0 + $0x10] sm:$0xff]
  %v34 = vld [vmem:[%s0 + $0x18] sm:$0xff]
  %v35 = vld [vmem:[%s0 + $0x20] sm:$0xff]
  %v36 = vld [vmem:[%s0 + $0x28] sm:$0xff]
  %v37 = vld [vmem:[%s0 + $0x30] sm:$0xff]
  %v38 = vld [vmem:[%s0 + $0x38] sm:$0xff]
  %v39 = vld [vmem:[%s0 + $0x40] sm:$0xff]
  %v40 = vld [vmem:[%s0 + $0x48] sm:$0xff]
  %v41 = vld [vmem:[%s0 + $0x50] sm:$0xff]
  %v42 = vld [vmem:[%s0 + $0x58] sm:$0xff]
  %v43 = vld [vmem:[%s0 + $0x60] sm:$0xff]
  %v44 = vld [vmem:[%s0 + $0x68] sm:$0xff]
  %v45 = vld [vmem:[%s0 + $0x70] sm:$0xff]
  %v46 = vld [vmem:[%s0 + $0x78] sm:$0xff]
  %v47 = vld [vmem:[%s0 + $0x80] sm:$0xff]
  %v48 = vld [vmem:[%s0 + $0x88] sm:$0xff]
  %v49 = vld [vmem:[%s0 + $0x90] sm:$0xff]
  %v50 = vld [vmem:[%s0 + $0x98] sm:$0xff]
  %v51 = vld [vmem:[%s0 + $0xa0] sm:$0xff]
  %v52 = vld [vmem:[%s0 + $0xa8] sm:$0xff]
  %v53 = vld [vmem:[%s0 + $0xb0] sm:$0xff]
  %v54 = vld [vmem:[%s0 + $0xb8] sm:$0xff]
  %v55 = vld [vmem:[%s0 + $0xc0] sm:$0xff]
  %v56 = vld [vmem:[%s0 + $0xc8] sm:$0xff]
  %v57 = vld [vmem:[%s0 + $0xd0] sm:$0xff]
  %v58 = vld [vmem:[%s0 + $0xd8] sm:$0xff]
  %v59 = vld [vmem:[%s0 + $0xe0] sm:$0xff]
  %v60 = vld [vmem:[%s0 + $0xe8] sm:$0xff]
  %v61 = vld [vmem:[%s0 + $0xf0] sm:$0xff]
  %v62 = vld [vmem:[%s0 + $0xf8] sm:$0xff]
  %v63 = vld [vmem:[%s1] sm:$0xff]
  %v64 = vld [vmem:[%s1 + $0x8] sm:$0xff]
  %v65 = vld [vmem:[%s1 + $0x10] sm:$0xff]
  %v66 = vld [vmem:[%s1 + $0x18] sm:$0xff]
  %v67 = vld [vmem:[%s1 + $0x20] sm:$0xff]
  %v68 = vld [vmem:[%s1 + $0x28] sm:$0xff]
  %v69 = vld [vmem:[%s1 + $0x30] sm:$0xff]
  %v70 = vld [vmem:[%s1 + $0x38] sm:$0xff]
  %v71 = vld [vmem:[%s1 + $0x40] sm:$0xff]
  %v72 = vld [vmem:[%s1 + $0x48] sm:$0xff]
  %v73 = vld [vmem:[%s1 + $0x50] sm:$0xff]
  %v74 = vld [vmem:[%s1 + $0x58] sm:$0xff]
  %v75 = vld [vmem:[%s1 + $0x60] sm:$0xff]
  %v76 = vld [vmem:[%s1 + $0x68] sm:$0xff]
  %v77 = vld [vmem:[%s1 + $0x70] sm:$0xff]
  %v78 = vld [vmem:[%s1 + $0x78] sm:$0xff]
  %v79 = vld [vmem:[%s1 + $0x80] sm:$0xff]
  %v80 = vld [vmem:[%s1 + $0x88] sm:$0xff]
  %v81 = vld [vmem:[%s1 + $0x90] sm:$0xff]
  %v82 = vld [vmem:[%s1 + $0x98] sm:$0xff]
  %v83 = vld [vmem:[%s1 + $0xa0] sm:$0xff]
  %v84 = vld [vmem:[%s1 + $0xa8] sm:$0xff]
  %v85 = vld [vmem:[%s1 + $0xb0] sm:$0xff]
  %v86 = vld [vmem:[%s1 + $0xb8] sm:$0xff]
  %v87 = vld [vmem:[%s1 + $0xc0] sm:$0xff]
  %v88 = vld [vmem:[%s1 + $0xc8] sm:$0xff]
  %v89 = vld [vmem:[%s1 + $0xd0] sm:$0xff]
  %v90 = vld [vmem:[%s1 + $0xd8] sm:$0xff]
  %v91 = vld [vmem:[%s1 + $0xe0] sm:$0xff]
  %v92 = vld [vmem:[%s1 + $0xe8] sm:$0xff]
  %v93 = vld [vmem:[%s1 + $0xf0] sm:$0xff]
  %v94 = vld [vmem:[%s1 + $0xf8] sm:$0xff]
  %v95 = vld [vmem:[%s2] sm:$0x1f]
  %97 = vset.pattern.permute.xlu0 0
  %98 = vperm.xlu0 %97, %v63
  %v99 = vpop.permute.xlu0 %98
  %102 = vset.pattern.permute.xlu0 0
  %103 = vperm.xlu0 %102, %v64
  %v104 = vpop.permute.xlu0 %103
  %107 = vset.pattern.permute.xlu0 0
  %108 = vperm.xlu0 %107, %v65
  %v109 = vpop.permute.xlu0 %108
  %112 = vset.pattern.permute.xlu0 0
  %113 = vperm.xlu0 %112, %v66
  %v114 = vpop.permute.xlu0 %113
  %117 = vset.pattern.permute.xlu0 0
  %118 = vperm.xlu0 %117, %v67
  %v119 = vpop.permute.xlu0 %118
  %122 = vset.pattern.permute.xlu0 0
  %123 = vperm.xlu0 %122, %v68
  %v124 = vpop.permute.xlu0 %123
  %127 = vset.pattern.permute.xlu0 0
  %128 = vperm.xlu0 %127, %v69
  %v129 = vpop.permute.xlu0 %128
  %132 = vset.pattern.permute.xlu0 0
  %133 = vperm.xlu0 %132, %v70
  %v134 = vpop.permute.xlu0 %133
  %137 = vset.pattern.permute.xlu0 0
  %138 = vperm.xlu0 %137, %v71
  %v139 = vpop.permute.xlu0 %138
  %142 = vset.pattern.permute.xlu0 0
  %143 = vperm.xlu0 %142, %v72
  %v144 = vpop.permute.xlu0 %143
  %147 = vset.pattern.permute.xlu0 0
  %148 = vperm.xlu0 %147, %v73
  %v149 = vpop.permute.xlu0 %148
  %152 = vset.pattern.permute.xlu0 0
  %153 = vperm.xlu0 %152, %v74
  %v154 = vpop.permute.xlu0 %153
  %157 = vset.pattern.permute.xlu0 0
  %158 = vperm.xlu0 %157, %v75
  %v159 = vpop.permute.xlu0 %158
  %162 = vset.pattern.permute.xlu0 0
  %163 = vperm.xlu0 %162, %v76
  %v164 = vpop.permute.xlu0 %163
  %167 = vset.pattern.permute.xlu0 0
  %168 = vperm.xlu0 %167, %v77
  %v169 = vpop.permute.xlu0 %168
  %172 = vset.pattern.permute.xlu0 0
  %173 = vperm.xlu0 %172, %v78
  %v174 = vpop.permute.xlu0 %173
  %177 = vset.pattern.permute.xlu0 0
  %178 = vperm.xlu0 %177, %v79
  %v179 = vpop.permute.xlu0 %178
  %182 = vset.pattern.permute.xlu0 0
  %183 = vperm.xlu0 %182, %v80
  %v184 = vpop.permute.xlu0 %183
  %187 = vset.pattern.permute.xlu0 0
  %188 = vperm.xlu0 %187, %v81
  %v189 = vpop.permute.xlu0 %188
  %192 = vset.pattern.permute.xlu0 0
  %193 = vperm.xlu0 %192, %v82
  %v194 = vpop.permute.xlu0 %193
  %197 = vset.pattern.permute.xlu0 0
  %198 = vperm.xlu0 %197, %v83
  %v199 = vpop.permute.xlu0 %198
  %202 = vset.pattern.permute.xlu0 0
  %203 = vperm.xlu0 %202, %v84
  %v204 = vpop.permute.xlu0 %203
  %207 = vset.pattern.permute.xlu0 0
  %208 = vperm.xlu0 %207, %v85
  %v209 = vpop.permute.xlu0 %208
  %212 = vset.pattern.permute.xlu0 0
  %213 = vperm.xlu0 %212, %v86
  %v214 = vpop.permute.xlu0 %213
  %217 = vset.pattern.permute.xlu0 0
  %218 = vperm.xlu0 %217, %v87
  %v219 = vpop.permute.xlu0 %218
  %222 = vset.pattern.permute.xlu0 0
  %223 = vperm.xlu0 %222, %v88
  %v224 = vpop.permute.xlu0 %223
  %227 = vset.pattern.permute.xlu0 0
  %228 = vperm.xlu0 %227, %v89
  %v229 = vpop.permute.xlu0 %228
  %232 = vset.pattern.permute.xlu0 0
  %233 = vperm.xlu0 %232, %v90
  %v234 = vpop.permute.xlu0 %233
  %237 = vset.pattern.permute.xlu0 0
  %238 = vperm.xlu0 %237, %v91
  %v239 = vpop.permute.xlu0 %238
  %242 = vset.pattern.permute.xlu0 0
  %243 = vperm.xlu0 %242, %v92
  %v244 = vpop.permute.xlu0 %243
  %247 = vset.pattern.permute.xlu0 0
  %248 = vperm.xlu0 %247, %v93
  %v249 = vpop.permute.xlu0 %248
  %252 = vset.pattern.permute.xlu0 0
  %253 = vperm.xlu0 %252, %v94
  %v254 = vpop.permute.xlu0 %253
  %v256 = vlaneseq
  %v257 = vshrl.u32 %v256, 7
  %v258 = vsub.s32 4, %v257
  %v259 = vrot.slane %v95, %v258
  %v260 = vmul.f32 %v99, %v259
  %v261 = vmul.f32 %v104, %v259
  %v262 = vmul.f32 %v109, %v259
  %v263 = vmul.f32 %v114, %v259
  %v264 = vmul.f32 %v119, %v259
  %v265 = vmul.f32 %v124, %v259
  %v266 = vmul.f32 %v129, %v259
  %v267 = vmul.f32 %v134, %v259
  %v268 = vmul.f32 %v139, %v259
  %v269 = vmul.f32 %v144, %v259
  %v270 = vmul.f32 %v149, %v259
  %v271 = vmul.f32 %v154, %v259
  %v272 = vmul.f32 %v159, %v259
  %v273 = vmul.f32 %v164, %v259
  %v274 = vmul.f32 %v169, %v259
  %v275 = vmul.f32 %v174, %v259
  %v276 = vmul.f32 %v179, %v259
  %v277 = vmul.f32 %v184, %v259
  %v278 = vmul.f32 %v189, %v259
  %v279 = vmul.f32 %v194, %v259
  %v280 = vmul.f32 %v199, %v259
  %v281 = vmul.f32 %v204, %v259
  %v282 = vmul.f32 %v209, %v259
  %v283 = vmul.f32 %v214, %v259
  %v284 = vmul.f32 %v219, %v259
  %v285 = vmul.f32 %v224, %v259
  %v286 = vmul.f32 %v229, %v259
  %v287 = vmul.f32 %v234, %v259
  %v288 = vmul.f32 %v239, %v259
  %v289 = vmul.f32 %v244, %v259
  %v290 = vmul.f32 %v249, %v259
  %v291 = vmul.f32 %v254, %v259
  %v292 = vld [vmem:[%s3] sm:$0x1]
  %v294 = vlaneseq
  %v295 = vshrl.u32 %v294, 7
  %v296 = vsub.s32 0, %v295
  %v297 = vrot.slane %v292, %v296
  %v299 = vadd.f32 %v260, %v297
  %v300 = vadd.f32 %v261, %v297
  %v301 = vadd.f32 %v262, %v297
  %v302 = vadd.f32 %v263, %v297
  %v303 = vadd.f32 %v264, %v297
  %v304 = vadd.f32 %v265, %v297
  %v305 = vadd.f32 %v266, %v297
  %v306 = vadd.f32 %v267, %v297
  %v307 = vadd.f32 %v268, %v297
  %v308 = vadd.f32 %v269, %v297
  %v309 = vadd.f32 %v270, %v297
  %v310 = vadd.f32 %v271, %v297
  %v311 = vadd.f32 %v272, %v297
  %v312 = vadd.f32 %v273, %v297
  %v313 = vadd.f32 %v274, %v297
  %v314 = vadd.f32 %v275, %v297
  %v315 = vadd.f32 %v276, %v297
  %v316 = vadd.f32 %v277, %v297
  %v317 = vadd.f32 %v278, %v297
  %v318 = vadd.f32 %v279, %v297
  %v319 = vadd.f32 %v280, %v297
  %v320 = vadd.f32 %v281, %v297
  %v321 = vadd.f32 %v282, %v297
  %v322 = vadd.f32 %v283, %v297
  %v323 = vadd.f32 %v284, %v297
  %v324 = vadd.f32 %v285, %v297
  %v325 = vadd.f32 %v286, %v297
  %v326 = vadd.f32 %v287, %v297
  %v327 = vadd.f32 %v288, %v297
  %v328 = vadd.f32 %v289, %v297
  %v329 = vadd.f32 %v290, %v297
  %v330 = vadd.f32 %v291, %v297
  %332 = vset.pattern.permute.xlu0 0
  %333 = vperm.xlu0 %332, %v31
  %v334 = vpop.permute.xlu0 %333
  %337 = vset.pattern.permute.xlu0 0
  %338 = vperm.xlu0 %337, %v32
  %v339 = vpop.permute.xlu0 %338
  %342 = vset.pattern.permute.xlu0 0
  %343 = vperm.xlu0 %342, %v33
  %v344 = vpop.permute.xlu0 %343
  %347 = vset.pattern.permute.xlu0 0
  %348 = vperm.xlu0 %347, %v34
  %v349 = vpop.permute.xlu0 %348
  %352 = vset.pattern.permute.xlu0 0
  %353 = vperm.xlu0 %352, %v35
  %v354 = vpop.permute.xlu0 %353
  %357 = vset.pattern.permute.xlu0 0
  %358 = vperm.xlu0 %357, %v36
  %v359 = vpop.permute.xlu0 %358
  %362 = vset.pattern.permute.xlu0 0
  %363 = vperm.xlu0 %362, %v37
  %v364 = vpop.permute.xlu0 %363
  %367 = vset.pattern.permute.xlu0 0
  %368 = vperm.xlu0 %367, %v38
  %v369 = vpop.permute.xlu0 %368
  %372 = vset.pattern.permute.xlu0 0
  %373 = vperm.xlu0 %372, %v39
  %v374 = vpop.permute.xlu0 %373
  %377 = vset.pattern.permute.xlu0 0
  %378 = vperm.xlu0 %377, %v40
  %v379 = vpop.permute.xlu0 %378
  %382 = vset.pattern.permute.xlu0 0
  %383 = vperm.xlu0 %382, %v41
  %v384 = vpop.permute.xlu0 %383
  %387 = vset.pattern.permute.xlu0 0
  %388 = vperm.xlu0 %387, %v42
  %v389 = vpop.permute.xlu0 %388
  %392 = vset.pattern.permute.xlu0 0
  %393 = vperm.xlu0 %392, %v43
  %v394 = vpop.permute.xlu0 %393
  %397 = vset.pattern.permute.xlu0 0
  %398 = vperm.xlu0 %397, %v44
  %v399 = vpop.permute.xlu0 %398
  %402 = vset.pattern.permute.xlu0 0
  %403 = vperm.xlu0 %402, %v45
  %v404 = vpop.permute.xlu0 %403
  %407 = vset.pattern.permute.xlu0 0
  %408 = vperm.xlu0 %407, %v46
  %v409 = vpop.permute.xlu0 %408
  %412 = vset.pattern.permute.xlu0 0
  %413 = vperm.xlu0 %412, %v47
  %v414 = vpop.permute.xlu0 %413
  %417 = vset.pattern.permute.xlu0 0
  %418 = vperm.xlu0 %417, %v48
  %v419 = vpop.permute.xlu0 %418
  %422 = vset.pattern.permute.xlu0 0
  %423 = vperm.xlu0 %422, %v49
  %v424 = vpop.permute.xlu0 %423
  %427 = vset.pattern.permute.xlu0 0
  %428 = vperm.xlu0 %427, %v50
  %v429 = vpop.permute.xlu0 %428
  %432 = vset.pattern.permute.xlu0 0
  %433 = vperm.xlu0 %432, %v51
  %v434 = vpop.permute.xlu0 %433
  %437 = vset.pattern.permute.xlu0 0
  %438 = vperm.xlu0 %437, %v52
  %v439 = vpop.permute.xlu0 %438
  %442 = vset.pattern.permute.xlu0 0
  %443 = vperm.xlu0 %442, %v53
  %v444 = vpop.permute.xlu0 %443
  %447 = vset.pattern.permute.xlu0 0
  %448 = vperm.xlu0 %447, %v54
  %v449 = vpop.permute.xlu0 %448
  %452 = vset.pattern.permute.xlu0 0
  %453 = vperm.xlu0 %452, %v55
  %v454 = vpop.permute.xlu0 %453
  %457 = vset.pattern.permute.xlu0 0
  %458 = vperm.xlu0 %457, %v56
  %v459 = vpop.permute.xlu0 %458
  %462 = vset.pattern.permute.xlu0 0
  %463 = vperm.xlu0 %462, %v57
  %v464 = vpop.permute.xlu0 %463
  %467 = vset.pattern.permute.xlu0 0
  %468 = vperm.xlu0 %467, %v58
  %v469 = vpop.permute.xlu0 %468
  %472 = vset.pattern.permute.xlu0 0
  %473 = vperm.xlu0 %472, %v59
  %v474 = vpop.permute.xlu0 %473
  %477 = vset.pattern.permute.xlu0 0
  %478 = vperm.xlu0 %477, %v60
  %v479 = vpop.permute.xlu0 %478
  %482 = vset.pattern.permute.xlu0 0
  %483 = vperm.xlu0 %482, %v61
  %v484 = vpop.permute.xlu0 %483
  %487 = vset.pattern.permute.xlu0 0
  %488 = vperm.xlu0 %487, %v62
  %v489 = vpop.permute.xlu0 %488
  %v491 = vlaneseq
  %v492 = vshrl.u32 %v491, 7
  %v493 = vsub.s32 0, %v492
  %v494 = vrot.slane %v95, %v493
  %v495 = vmul.f32 %v334, %v494
  %v496 = vmul.f32 %v339, %v494
  %v497 = vmul.f32 %v344, %v494
  %v498 = vmul.f32 %v349, %v494
  %v499 = vmul.f32 %v354, %v494
  %v500 = vmul.f32 %v359, %v494
  %v501 = vmul.f32 %v364, %v494
  %v502 = vmul.f32 %v369, %v494
  %v503 = vmul.f32 %v374, %v494
  %v504 = vmul.f32 %v379, %v494
  %v505 = vmul.f32 %v384, %v494
  %v506 = vmul.f32 %v389, %v494
  %v507 = vmul.f32 %v394, %v494
  %v508 = vmul.f32 %v399, %v494
  %v509 = vmul.f32 %v404, %v494
  %v510 = vmul.f32 %v409, %v494
  %v511 = vmul.f32 %v414, %v494
  %v512 = vmul.f32 %v419, %v494
  %v513 = vmul.f32 %v424, %v494
  %v514 = vmul.f32 %v429, %v494
  %v515 = vmul.f32 %v434, %v494
  %v516 = vmul.f32 %v439, %v494
  %v517 = vmul.f32 %v444, %v494
  %v518 = vmul.f32 %v449, %v494
  %v519 = vmul.f32 %v454, %v494
  %v520 = vmul.f32 %v459, %v494
  %v521 = vmul.f32 %v464, %v494
  %v522 = vmul.f32 %v469, %v494
  %v523 = vmul.f32 %v474, %v494
  %v524 = vmul.f32 %v479, %v494
  %v525 = vmul.f32 %v484, %v494
  %v526 = vmul.f32 %v489, %v494
  %v527 = vadd.f32 %v299, %v495
  %v528 = vadd.f32 %v300, %v496
  %v529 = vadd.f32 %v301, %v497
  %v530 = vadd.f32 %v302, %v498
  %v531 = vadd.f32 %v303, %v499
  %v532 = vadd.f32 %v304, %v500
  %v533 = vadd.f32 %v305, %v501
  %v534 = vadd.f32 %v306, %v502
  %v535 = vadd.f32 %v307, %v503
  %v536 = vadd.f32 %v308, %v504
  %v537 = vadd.f32 %v309, %v505
  %v538 = vadd.f32 %v310, %v506
  %v539 = vadd.f32 %v311, %v507
  %v540 = vadd.f32 %v312, %v508
  %v541 = vadd.f32 %v313, %v509
  %v542 = vadd.f32 %v314, %v510
  %v543 = vadd.f32 %v315, %v511
  %v544 = vadd.f32 %v316, %v512
  %v545 = vadd.f32 %v317, %v513
  %v546 = vadd.f32 %v318, %v514
  %v547 = vadd.f32 %v319, %v515
  %v548 = vadd.f32 %v320, %v516
  %v549 = vadd.f32 %v321, %v517
  %v550 = vadd.f32 %v322, %v518
  %v551 = vadd.f32 %v323, %v519
  %v552 = vadd.f32 %v324, %v520
  %v553 = vadd.f32 %v325, %v521
  %v554 = vadd.f32 %v326, %v522
  %v555 = vadd.f32 %v327, %v523
  %v556 = vadd.f32 %v328, %v524
  %v557 = vadd.f32 %v329, %v525
  %v558 = vadd.f32 %v330, %v526
  %559 = vset.pattern.permute.xlu0 1
  %560 = vperm.xlu0 %559, %v31
  %v561 = vpop.permute.xlu0 %560
  %563 = vset.pattern.permute.xlu0 1
  %564 = vperm.xlu0 %563, %v32
  %v565 = vpop.permute.xlu0 %564
  %567 = vset.pattern.permute.xlu0 1
  %568 = vperm.xlu0 %567, %v33
  %v569 = vpop.permute.xlu0 %568
  %571 = vset.pattern.permute.xlu0 1
  %572 = vperm.xlu0 %571, %v34
  %v573 = vpop.permute.xlu0 %572
  %575 = vset.pattern.permute.xlu0 1
  %576 = vperm.xlu0 %575, %v35
  %v577 = vpop.permute.xlu0 %576
  %579 = vset.pattern.permute.xlu0 1
  %580 = vperm.xlu0 %579, %v36
  %v581 = vpop.permute.xlu0 %580
  %583 = vset.pattern.permute.xlu0 1
  %584 = vperm.xlu0 %583, %v37
  %v585 = vpop.permute.xlu0 %584
  %587 = vset.pattern.permute.xlu0 1
  %588 = vperm.xlu0 %587, %v38
  %v589 = vpop.permute.xlu0 %588
  %591 = vset.pattern.permute.xlu0 1
  %592 = vperm.xlu0 %591, %v39
  %v593 = vpop.permute.xlu0 %592
  %595 = vset.pattern.permute.xlu0 1
  %596 = vperm.xlu0 %595, %v40
  %v597 = vpop.permute.xlu0 %596
  %599 = vset.pattern.permute.xlu0 1
  %600 = vperm.xlu0 %599, %v41
  %v601 = vpop.permute.xlu0 %600
  %603 = vset.pattern.permute.xlu0 1
  %604 = vperm.xlu0 %603, %v42
  %v605 = vpop.permute.xlu0 %604
  %607 = vset.pattern.permute.xlu0 1
  %608 = vperm.xlu0 %607, %v43
  %v609 = vpop.permute.xlu0 %608
  %611 = vset.pattern.permute.xlu0 1
  %612 = vperm.xlu0 %611, %v44
  %v613 = vpop.permute.xlu0 %612
  %615 = vset.pattern.permute.xlu0 1
  %616 = vperm.xlu0 %615, %v45
  %v617 = vpop.permute.xlu0 %616
  %619 = vset.pattern.permute.xlu0 1
  %620 = vperm.xlu0 %619, %v46
  %v621 = vpop.permute.xlu0 %620
  %623 = vset.pattern.permute.xlu0 1
  %624 = vperm.xlu0 %623, %v47
  %v625 = vpop.permute.xlu0 %624
  %627 = vset.pattern.permute.xlu0 1
  %628 = vperm.xlu0 %627, %v48
  %v629 = vpop.permute.xlu0 %628
  %631 = vset.pattern.permute.xlu0 1
  %632 = vperm.xlu0 %631, %v49
  %v633 = vpop.permute.xlu0 %632
  %635 = vset.pattern.permute.xlu0 1
  %636 = vperm.xlu0 %635, %v50
  %v637 = vpop.permute.xlu0 %636
  %639 = vset.pattern.permute.xlu0 1
  %640 = vperm.xlu0 %639, %v51
  %v641 = vpop.permute.xlu0 %640
  %643 = vset.pattern.permute.xlu0 1
  %644 = vperm.xlu0 %643, %v52
  %v645 = vpop.permute.xlu0 %644
  %647 = vset.pattern.permute.xlu0 1
  %648 = vperm.xlu0 %647, %v53
  %v649 = vpop.permute.xlu0 %648
  %651 = vset.pattern.permute.xlu0 1
  %652 = vperm.xlu0 %651, %v54
  %v653 = vpop.permute.xlu0 %652
  %655 = vset.pattern.permute.xlu0 1
  %656 = vperm.xlu0 %655, %v55
  %v657 = vpop.permute.xlu0 %656
  %659 = vset.pattern.permute.xlu0 1
  %660 = vperm.xlu0 %659, %v56
  %v661 = vpop.permute.xlu0 %660
  %663 = vset.pattern.permute.xlu0 1
  %664 = vperm.xlu0 %663, %v57
  %v665 = vpop.permute.xlu0 %664
  %667 = vset.pattern.permute.xlu0 1
  %668 = vperm.xlu0 %667, %v58
  %v669 = vpop.permute.xlu0 %668
  %671 = vset.pattern.permute.xlu0 1
  %672 = vperm.xlu0 %671, %v59
  %v673 = vpop.permute.xlu0 %672
  %675 = vset.pattern.permute.xlu0 1
  %676 = vperm.xlu0 %675, %v60
  %v677 = vpop.permute.xlu0 %676
  %679 = vset.pattern.permute.xlu0 1
  %680 = vperm.xlu0 %679, %v61
  %v681 = vpop.permute.xlu0 %680
  %683 = vset.pattern.permute.xlu0 1
  %684 = vperm.xlu0 %683, %v62
  %v685 = vpop.permute.xlu0 %684
  %v687 = vlaneseq
  %v688 = vshrl.u32 %v687, 7
  %v689 = vsub.s32 1, %v688
  %v690 = vrot.slane %v95, %v689
  %v691 = vmul.f32 %v561, %v690
  %v692 = vmul.f32 %v565, %v690
  %v693 = vmul.f32 %v569, %v690
  %v694 = vmul.f32 %v573, %v690
  %v695 = vmul.f32 %v577, %v690
  %v696 = vmul.f32 %v581, %v690
  %v697 = vmul.f32 %v585, %v690
  %v698 = vmul.f32 %v589, %v690
  %v699 = vmul.f32 %v593, %v690
  %v700 = vmul.f32 %v597, %v690
  %v701 = vmul.f32 %v601, %v690
  %v702 = vmul.f32 %v605, %v690
  %v703 = vmul.f32 %v609, %v690
  %v704 = vmul.f32 %v613, %v690
  %v705 = vmul.f32 %v617, %v690
  %v706 = vmul.f32 %v621, %v690
  %v707 = vmul.f32 %v625, %v690
  %v708 = vmul.f32 %v629, %v690
  %v709 = vmul.f32 %v633, %v690
  %v710 = vmul.f32 %v637, %v690
  %v711 = vmul.f32 %v641, %v690
  %v712 = vmul.f32 %v645, %v690
  %v713 = vmul.f32 %v649, %v690
  %v714 = vmul.f32 %v653, %v690
  %v715 = vmul.f32 %v657, %v690
  %v716 = vmul.f32 %v661, %v690
  %v717 = vmul.f32 %v665, %v690
  %v718 = vmul.f32 %v669, %v690
  %v719 = vmul.f32 %v673, %v690
  %v720 = vmul.f32 %v677, %v690
  %v721 = vmul.f32 %v681, %v690
  %v722 = vmul.f32 %v685, %v690
  %v723 = vadd.f32 %v527, %v691
  %v724 = vadd.f32 %v528, %v692
  %v725 = vadd.f32 %v529, %v693
  %v726 = vadd.f32 %v530, %v694
  %v727 = vadd.f32 %v531, %v695
  %v728 = vadd.f32 %v532, %v696
  %v729 = vadd.f32 %v533, %v697
  %v730 = vadd.f32 %v534, %v698
  %v731 = vadd.f32 %v535, %v699
  %v732 = vadd.f32 %v536, %v700
  %v733 = vadd.f32 %v537, %v701
  %v734 = vadd.f32 %v538, %v702
  %v735 = vadd.f32 %v539, %v703
  %v736 = vadd.f32 %v540, %v704
  %v737 = vadd.f32 %v541, %v705
  %v738 = vadd.f32 %v542, %v706
  %v739 = vadd.f32 %v543, %v707
  %v740 = vadd.f32 %v544, %v708
  %v741 = vadd.f32 %v545, %v709
  %v742 = vadd.f32 %v546, %v710
  %v743 = vadd.f32 %v547, %v711
  %v744 = vadd.f32 %v548, %v712
  %v745 = vadd.f32 %v549, %v713
  %v746 = vadd.f32 %v550, %v714
  %v747 = vadd.f32 %v551, %v715
  %v748 = vadd.f32 %v552, %v716
  %v749 = vadd.f32 %v553, %v717
  %v750 = vadd.f32 %v554, %v718
  %v751 = vadd.f32 %v555, %v719
  %v752 = vadd.f32 %v556, %v720
  %v753 = vadd.f32 %v557, %v721
  %v754 = vadd.f32 %v558, %v722
  %755 = vset.pattern.permute.xlu0 2
  %756 = vperm.xlu0 %755, %v31
  %v757 = vpop.permute.xlu0 %756
  %759 = vset.pattern.permute.xlu0 2
  %760 = vperm.xlu0 %759, %v32
  %v761 = vpop.permute.xlu0 %760
  %763 = vset.pattern.permute.xlu0 2
  %764 = vperm.xlu0 %763, %v33
  %v765 = vpop.permute.xlu0 %764
  %767 = vset.pattern.permute.xlu0 2
  %768 = vperm.xlu0 %767, %v34
  %v769 = vpop.permute.xlu0 %768
  %771 = vset.pattern.permute.xlu0 2
  %772 = vperm.xlu0 %771, %v35
  %v773 = vpop.permute.xlu0 %772
  %775 = vset.pattern.permute.xlu0 2
  %776 = vperm.xlu0 %775, %v36
  %v777 = vpop.permute.xlu0 %776
  %779 = vset.pattern.permute.xlu0 2
  %780 = vperm.xlu0 %779, %v37
  %v781 = vpop.permute.xlu0 %780
  %783 = vset.pattern.permute.xlu0 2
  %784 = vperm.xlu0 %783, %v38
  %v785 = vpop.permute.xlu0 %784
  %787 = vset.pattern.permute.xlu0 2
  %788 = vperm.xlu0 %787, %v39
  %v789 = vpop.permute.xlu0 %788
  %791 = vset.pattern.permute.xlu0 2
  %792 = vperm.xlu0 %791, %v40
  %v793 = vpop.permute.xlu0 %792
  %795 = vset.pattern.permute.xlu0 2
  %796 = vperm.xlu0 %795, %v41
  %v797 = vpop.permute.xlu0 %796
  %799 = vset.pattern.permute.xlu0 2
  %800 = vperm.xlu0 %799, %v42
  %v801 = vpop.permute.xlu0 %800
  %803 = vset.pattern.permute.xlu0 2
  %804 = vperm.xlu0 %803, %v43
  %v805 = vpop.permute.xlu0 %804
  %807 = vset.pattern.permute.xlu0 2
  %808 = vperm.xlu0 %807, %v44
  %v809 = vpop.permute.xlu0 %808
  %811 = vset.pattern.permute.xlu0 2
  %812 = vperm.xlu0 %811, %v45
  %v813 = vpop.permute.xlu0 %812
  %815 = vset.pattern.permute.xlu0 2
  %816 = vperm.xlu0 %815, %v46
  %v817 = vpop.permute.xlu0 %816
  %819 = vset.pattern.permute.xlu0 2
  %820 = vperm.xlu0 %819, %v47
  %v821 = vpop.permute.xlu0 %820
  %823 = vset.pattern.permute.xlu0 2
  %824 = vperm.xlu0 %823, %v48
  %v825 = vpop.permute.xlu0 %824
  %827 = vset.pattern.permute.xlu0 2
  %828 = vperm.xlu0 %827, %v49
  %v829 = vpop.permute.xlu0 %828
  %831 = vset.pattern.permute.xlu0 2
  %832 = vperm.xlu0 %831, %v50
  %v833 = vpop.permute.xlu0 %832
  %835 = vset.pattern.permute.xlu0 2
  %836 = vperm.xlu0 %835, %v51
  %v837 = vpop.permute.xlu0 %836
  %839 = vset.pattern.permute.xlu0 2
  %840 = vperm.xlu0 %839, %v52
  %v841 = vpop.permute.xlu0 %840
  %843 = vset.pattern.permute.xlu0 2
  %844 = vperm.xlu0 %843, %v53
  %v845 = vpop.permute.xlu0 %844
  %847 = vset.pattern.permute.xlu0 2
  %848 = vperm.xlu0 %847, %v54
  %v849 = vpop.permute.xlu0 %848
  %851 = vset.pattern.permute.xlu0 2
  %852 = vperm.xlu0 %851, %v55
  %v853 = vpop.permute.xlu0 %852
  %855 = vset.pattern.permute.xlu0 2
  %856 = vperm.xlu0 %855, %v56
  %v857 = vpop.permute.xlu0 %856
  %859 = vset.pattern.permute.xlu0 2
  %860 = vperm.xlu0 %859, %v57
  %v861 = vpop.permute.xlu0 %860
  %863 = vset.pattern.permute.xlu0 2
  %864 = vperm.xlu0 %863, %v58
  %v865 = vpop.permute.xlu0 %864
  %867 = vset.pattern.permute.xlu0 2
  %868 = vperm.xlu0 %867, %v59
  %v869 = vpop.permute.xlu0 %868
  %871 = vset.pattern.permute.xlu0 2
  %872 = vperm.xlu0 %871, %v60
  %v873 = vpop.permute.xlu0 %872
  %875 = vset.pattern.permute.xlu0 2
  %876 = vperm.xlu0 %875, %v61
  %v877 = vpop.permute.xlu0 %876
  %879 = vset.pattern.permute.xlu0 2
  %880 = vperm.xlu0 %879, %v62
  %v881 = vpop.permute.xlu0 %880
  %v883 = vlaneseq
  %v884 = vshrl.u32 %v883, 7
  %v885 = vsub.s32 2, %v884
  %v886 = vrot.slane %v95, %v885
  %v887 = vmul.f32 %v757, %v886
  %v888 = vmul.f32 %v761, %v886
  %v889 = vmul.f32 %v765, %v886
  %v890 = vmul.f32 %v769, %v886
  %v891 = vmul.f32 %v773, %v886
  %v892 = vmul.f32 %v777, %v886
  %v893 = vmul.f32 %v781, %v886
  %v894 = vmul.f32 %v785, %v886
  %v895 = vmul.f32 %v789, %v886
  %v896 = vmul.f32 %v793, %v886
  %v897 = vmul.f32 %v797, %v886
  %v898 = vmul.f32 %v801, %v886
  %v899 = vmul.f32 %v805, %v886
  %v900 = vmul.f32 %v809, %v886
  %v901 = vmul.f32 %v813, %v886
  %v902 = vmul.f32 %v817, %v886
  %v903 = vmul.f32 %v821, %v886
  %v904 = vmul.f32 %v825, %v886
  %v905 = vmul.f32 %v829, %v886
  %v906 = vmul.f32 %v833, %v886
  %v907 = vmul.f32 %v837, %v886
  %v908 = vmul.f32 %v841, %v886
  %v909 = vmul.f32 %v845, %v886
  %v910 = vmul.f32 %v849, %v886
  %v911 = vmul.f32 %v853, %v886
  %v912 = vmul.f32 %v857, %v886
  %v913 = vmul.f32 %v861, %v886
  %v914 = vmul.f32 %v865, %v886
  %v915 = vmul.f32 %v869, %v886
  %v916 = vmul.f32 %v873, %v886
  %v917 = vmul.f32 %v877, %v886
  %v918 = vmul.f32 %v881, %v886
  %v919 = vadd.f32 %v723, %v887
  %v920 = vadd.f32 %v724, %v888
  %v921 = vadd.f32 %v725, %v889
  %v922 = vadd.f32 %v726, %v890
  %v923 = vadd.f32 %v727, %v891
  %v924 = vadd.f32 %v728, %v892
  %v925 = vadd.f32 %v729, %v893
  %v926 = vadd.f32 %v730, %v894
  %v927 = vadd.f32 %v731, %v895
  %v928 = vadd.f32 %v732, %v896
  %v929 = vadd.f32 %v733, %v897
  %v930 = vadd.f32 %v734, %v898
  %v931 = vadd.f32 %v735, %v899
  %v932 = vadd.f32 %v736, %v900
  %v933 = vadd.f32 %v737, %v901
  %v934 = vadd.f32 %v738, %v902
  %v935 = vadd.f32 %v739, %v903
  %v936 = vadd.f32 %v740, %v904
  %v937 = vadd.f32 %v741, %v905
  %v938 = vadd.f32 %v742, %v906
  %v939 = vadd.f32 %v743, %v907
  %v940 = vadd.f32 %v744, %v908
  %v941 = vadd.f32 %v745, %v909
  %v942 = vadd.f32 %v746, %v910
  %v943 = vadd.f32 %v747, %v911
  %v944 = vadd.f32 %v748, %v912
  %v945 = vadd.f32 %v749, %v913
  %v946 = vadd.f32 %v750, %v914
  %v947 = vadd.f32 %v751, %v915
  %v948 = vadd.f32 %v752, %v916
  %v949 = vadd.f32 %v753, %v917
  %v950 = vadd.f32 %v754, %v918
  %951 = vset.pattern.permute.xlu0 3
  %952 = vperm.xlu0 %951, %v31
  %v953 = vpop.permute.xlu0 %952
  %955 = vset.pattern.permute.xlu0 3
  %956 = vperm.xlu0 %955, %v32
  %v957 = vpop.permute.xlu0 %956
  %959 = vset.pattern.permute.xlu0 3
  %960 = vperm.xlu0 %959, %v33
  %v961 = vpop.permute.xlu0 %960
  %963 = vset.pattern.permute.xlu0 3
  %964 = vperm.xlu0 %963, %v34
  %v965 = vpop.permute.xlu0 %964
  %967 = vset.pattern.permute.xlu0 3
  %968 = vperm.xlu0 %967, %v35
  %v969 = vpop.permute.xlu0 %968
  %971 = vset.pattern.permute.xlu0 3
  %972 = vperm.xlu0 %971, %v36
  %v973 = vpop.permute.xlu0 %972
  %975 = vset.pattern.permute.xlu0 3
  %976 = vperm.xlu0 %975, %v37
  %v977 = vpop.permute.xlu0 %976
  %979 = vset.pattern.permute.xlu0 3
  %980 = vperm.xlu0 %979, %v38
  %v981 = vpop.permute.xlu0 %980
  %983 = vset.pattern.permute.xlu0 3
  %984 = vperm.xlu0 %983, %v39
  %v985 = vpop.permute.xlu0 %984
  %987 = vset.pattern.permute.xlu0 3
  %988 = vperm.xlu0 %987, %v40
  %v989 = vpop.permute.xlu0 %988
  %991 = vset.pattern.permute.xlu0 3
  %992 = vperm.xlu0 %991, %v41
  %v993 = vpop.permute.xlu0 %992
  %995 = vset.pattern.permute.xlu0 3
  %996 = vperm.xlu0 %995, %v42
  %v997 = vpop.permute.xlu0 %996
  %999 = vset.pattern.permute.xlu0 3
  %1000 = vperm.xlu0 %999, %v43
  %v1001 = vpop.permute.xlu0 %1000
  %1003 = vset.pattern.permute.xlu0 3
  %1004 = vperm.xlu0 %1003, %v44
  %v1005 = vpop.permute.xlu0 %1004
  %1007 = vset.pattern.permute.xlu0 3
  %1008 = vperm.xlu0 %1007, %v45
  %v1009 = vpop.permute.xlu0 %1008
  %1011 = vset.pattern.permute.xlu0 3
  %1012 = vperm.xlu0 %1011, %v46
  %v1013 = vpop.permute.xlu0 %1012
  %1015 = vset.pattern.permute.xlu0 3
  %1016 = vperm.xlu0 %1015, %v47
  %v1017 = vpop.permute.xlu0 %1016
  %1019 = vset.pattern.permute.xlu0 3
  %1020 = vperm.xlu0 %1019, %v48
  %v1021 = vpop.permute.xlu0 %1020
  %1023 = vset.pattern.permute.xlu0 3
  %1024 = vperm.xlu0 %1023, %v49
  %v1025 = vpop.permute.xlu0 %1024
  %1027 = vset.pattern.permute.xlu0 3
  %1028 = vperm.xlu0 %1027, %v50
  %v1029 = vpop.permute.xlu0 %1028
  %1031 = vset.pattern.permute.xlu0 3
  %1032 = vperm.xlu0 %1031, %v51
  %v1033 = vpop.permute.xlu0 %1032
  %1035 = vset.pattern.permute.xlu0 3
  %1036 = vperm.xlu0 %1035, %v52
  %v1037 = vpop.permute.xlu0 %1036
  %1039 = vset.pattern.permute.xlu0 3
  %1040 = vperm.xlu0 %1039, %v53
  %v1041 = vpop.permute.xlu0 %1040
  %1043 = vset.pattern.permute.xlu0 3
  %1044 = vperm.xlu0 %1043, %v54
  %v1045 = vpop.permute.xlu0 %1044
  %1047 = vset.pattern.permute.xlu0 3
  %1048 = vperm.xlu0 %1047, %v55
  %v1049 = vpop.permute.xlu0 %1048
  %1051 = vset.pattern.permute.xlu0 3
  %1052 = vperm.xlu0 %1051, %v56
  %v1053 = vpop.permute.xlu0 %1052
  %1055 = vset.pattern.permute.xlu0 3
  %1056 = vperm.xlu0 %1055, %v57
  %v1057 = vpop.permute.xlu0 %1056
  %1059 = vset.pattern.permute.xlu0 3
  %1060 = vperm.xlu0 %1059, %v58
  %v1061 = vpop.permute.xlu0 %1060
  %1063 = vset.pattern.permute.xlu0 3
  %1064 = vperm.xlu0 %1063, %v59
  %v1065 = vpop.permute.xlu0 %1064
  %1067 = vset.pattern.permute.xlu0 3
  %1068 = vperm.xlu0 %1067, %v60
  %v1069 = vpop.permute.xlu0 %1068
  %1071 = vset.pattern.permute.xlu0 3
  %1072 = vperm.xlu0 %1071, %v61
  %v1073 = vpop.permute.xlu0 %1072
  %1075 = vset.pattern.permute.xlu0 3
  %1076 = vperm.xlu0 %1075, %v62
  %v1077 = vpop.permute.xlu0 %1076
  %v1079 = vlaneseq
  %v1080 = vshrl.u32 %v1079, 7
  %v1081 = vsub.s32 3, %v1080
  %v1082 = vrot.slane %v95, %v1081
  %v1083 = vmul.f32 %v953, %v1082
  %v1084 = vmul.f32 %v957, %v1082
  %v1085 = vmul.f32 %v961, %v1082
  %v1086 = vmul.f32 %v965, %v1082
  %v1087 = vmul.f32 %v969, %v1082
  %v1088 = vmul.f32 %v973, %v1082
  %v1089 = vmul.f32 %v977, %v1082
  %v1090 = vmul.f32 %v981, %v1082
  %v1091 = vmul.f32 %v985, %v1082
  %v1092 = vmul.f32 %v989, %v1082
  %v1093 = vmul.f32 %v993, %v1082
  %v1094 = vmul.f32 %v997, %v1082
  %v1095 = vmul.f32 %v1001, %v1082
  %v1096 = vmul.f32 %v1005, %v1082
  %v1097 = vmul.f32 %v1009, %v1082
  %v1098 = vmul.f32 %v1013, %v1082
  %v1099 = vmul.f32 %v1017, %v1082
  %v1100 = vmul.f32 %v1021, %v1082
  %v1101 = vmul.f32 %v1025, %v1082
  %v1102 = vmul.f32 %v1029, %v1082
  %v1103 = vmul.f32 %v1033, %v1082
  %v1104 = vmul.f32 %v1037, %v1082
  %v1105 = vmul.f32 %v1041, %v1082
  %v1106 = vmul.f32 %v1045, %v1082
  %v1107 = vmul.f32 %v1049, %v1082
  %v1108 = vmul.f32 %v1053, %v1082
  %v1109 = vmul.f32 %v1057, %v1082
  %v1110 = vmul.f32 %v1061, %v1082
  %v1111 = vmul.f32 %v1065, %v1082
  %v1112 = vmul.f32 %v1069, %v1082
  %v1113 = vmul.f32 %v1073, %v1082
  %v1114 = vmul.f32 %v1077, %v1082
  %v1115 = vadd.f32 %v919, %v1083
  %v1116 = vadd.f32 %v920, %v1084
  %v1117 = vadd.f32 %v921, %v1085
  %v1118 = vadd.f32 %v922, %v1086
  %v1119 = vadd.f32 %v923, %v1087
  %v1120 = vadd.f32 %v924, %v1088
  %v1121 = vadd.f32 %v925, %v1089
  %v1122 = vadd.f32 %v926, %v1090
  %v1123 = vadd.f32 %v927, %v1091
  %v1124 = vadd.f32 %v928, %v1092
  %v1125 = vadd.f32 %v929, %v1093
  %v1126 = vadd.f32 %v930, %v1094
  %v1127 = vadd.f32 %v931, %v1095
  %v1128 = vadd.f32 %v932, %v1096
  %v1129 = vadd.f32 %v933, %v1097
  %v1130 = vadd.f32 %v934, %v1098
  %v1131 = vadd.f32 %v935, %v1099
  %v1132 = vadd.f32 %v936, %v1100
  %v1133 = vadd.f32 %v937, %v1101
  %v1134 = vadd.f32 %v938, %v1102
  %v1135 = vadd.f32 %v939, %v1103
  %v1136 = vadd.f32 %v940, %v1104
  %v1137 = vadd.f32 %v941, %v1105
  %v1138 = vadd.f32 %v942, %v1106
  %v1139 = vadd.f32 %v943, %v1107
  %v1140 = vadd.f32 %v944, %v1108
  %v1141 = vadd.f32 %v945, %v1109
  %v1142 = vadd.f32 %v946, %v1110
  %v1143 = vadd.f32 %v947, %v1111
  %v1144 = vadd.f32 %v948, %v1112
  %v1145 = vadd.f32 %v949, %v1113
  %v1146 = vadd.f32 %v950, %v1114
  %v1147 = vmax.f32 %v1115, 0.0
  %v1148 = vmax.f32 %v1116, 0.0
  %v1149 = vmax.f32 %v1117, 0.0
  %v1150 = vmax.f32 %v1118, 0.0
  %v1151 = vmax.f32 %v1119, 0.0
  %v1152 = vmax.f32 %v1120, 0.0
  %v1153 = vmax.f32 %v1121, 0.0
  %v1154 = vmax.f32 %v1122, 0.0
  %v1155 = vmax.f32 %v1123, 0.0
  %v1156 = vmax.f32 %v1124, 0.0
  %v1157 = vmax.f32 %v1125, 0.0
  %v1158 = vmax.f32 %v1126, 0.0
  %v1159 = vmax.f32 %v1127, 0.0
  %v1160 = vmax.f32 %v1128, 0.0
  %v1161 = vmax.f32 %v1129, 0.0
  %v1162 = vmax.f32 %v1130, 0.0
  %v1163 = vmax.f32 %v1131, 0.0
  %v1164 = vmax.f32 %v1132, 0.0
  %v1165 = vmax.f32 %v1133, 0.0
  %v1166 = vmax.f32 %v1134, 0.0
  %v1167 = vmax.f32 %v1135, 0.0
  %v1168 = vmax.f32 %v1136, 0.0
  %v1169 = vmax.f32 %v1137, 0.0
  %v1170 = vmax.f32 %v1138, 0.0
  %v1171 = vmax.f32 %v1139, 0.0
  %v1172 = vmax.f32 %v1140, 0.0
  %v1173 = vmax.f32 %v1141, 0.0
  %v1174 = vmax.f32 %v1142, 0.0
  %v1175 = vmax.f32 %v1143, 0.0
  %v1176 = vmax.f32 %v1144, 0.0
  %v1177 = vmax.f32 %v1145, 0.0
  %v1178 = vmax.f32 %v1146, 0.0
  %v1179 = vld [vmem:[%s4] sm:$0xff]
  %v1180 = vld [vmem:[%s4 + $0x8] sm:$0xff]
  %v1181 = vld [vmem:[%s4 + $0x10] sm:$0xff]
  %v1182 = vld [vmem:[%s4 + $0x18] sm:$0xff]
  %v1183 = vld [vmem:[%s4 + $0x20] sm:$0xff]
  %v1184 = vld [vmem:[%s4 + $0x28] sm:$0xff]
  %v1185 = vld [vmem:[%s4 + $0x30] sm:$0xff]
  %v1186 = vld [vmem:[%s4 + $0x38] sm:$0xff]
  %v1187 = vld [vmem:[%s4 + $0x40] sm:$0xff]
  %v1188 = vld [vmem:[%s4 + $0x48] sm:$0xff]
  %v1189 = vld [vmem:[%s4 + $0x50] sm:$0xff]
  %v1190 = vld [vmem:[%s4 + $0x58] sm:$0xff]
  %v1191 = vld [vmem:[%s4 + $0x60] sm:$0xff]
  %v1192 = vld [vmem:[%s4 + $0x68] sm:$0xff]
  %v1193 = vld [vmem:[%s4 + $0x70] sm:$0xff]
  %v1194 = vld [vmem:[%s4 + $0x78] sm:$0xff]
  %v1195 = vld [vmem:[%s5] sm:$0x1]
  %v1197 = vlaneseq
  %v1198 = vshrl.u32 %v1197, 7
  %v1199 = vsub.s32 0, %v1198
  %v1200 = vrot.slane %v1195, %v1199
  %1202 = vmatprep.subr.mxu0 0.0
  %1203 = vmatpush1.msra.mxu0 %v1179
  %1204 = vmatprep.subr.mxu0 0.0
  %1205 = vmatpush1.msra.mxu0 %v1180
  %1206 = vmatprep.subr.mxu0 0.0
  %1207 = vmatpush1.msra.mxu0 %v1181
  %1208 = vmatprep.subr.mxu0 0.0
  %1209 = vmatpush1.msra.mxu0 %v1182
  %1210 = vmatprep.subr.mxu0 0.0
  %1211 = vmatpush1.msra.mxu0 %v1183
  %1212 = vmatprep.subr.mxu0 0.0
  %1213 = vmatpush1.msra.mxu0 %v1184
  %1214 = vmatprep.subr.mxu0 0.0
  %1215 = vmatpush1.msra.mxu0 %v1185
  %1216 = vmatprep.subr.mxu0 0.0
  %1217 = vmatpush1.msra.mxu0 %v1186
  %1218 = vmatprep.subr.mxu0 0.0
  %1219 = vmatpush1.msra.mxu0 %v1187
  %1220 = vmatprep.subr.mxu0 0.0
  %1221 = vmatpush1.msra.mxu0 %v1188
  %1222 = vmatprep.subr.mxu0 0.0
  %1223 = vmatpush1.msra.mxu0 %v1189
  %1224 = vmatprep.subr.mxu0 0.0
  %1225 = vmatpush1.msra.mxu0 %v1190
  %1226 = vmatprep.subr.mxu0 0.0
  %1227 = vmatpush1.msra.mxu0 %v1191
  %1228 = vmatprep.subr.mxu0 0.0
  %1229 = vmatpush1.msra.mxu0 %v1192
  %1230 = vmatprep.subr.mxu0 0.0
  %1231 = vmatpush1.msra.mxu0 %v1193
  %1232 = vmatprep.subr.mxu0 0.0
  %1233 = vmatpush1.msra.mxu0 %v1194
  %1234 = vmatprep.subr.mxu0 0.0
  %1235 = vmatpush1.msra.mxu0 0.0
  %1236 = vmatprep.subr.mxu0 0.0
  %1237 = vmatpush1.msra.mxu0 0.0
  %1238 = vmatprep.subr.mxu0 0.0
  %1239 = vmatpush1.msra.mxu0 0.0
  %1240 = vmatprep.subr.mxu0 0.0
  %1241 = vmatpush1.msra.mxu0 0.0
  %1242 = vmatprep.subr.mxu0 0.0
  %1243 = vmatpush1.msra.mxu0 0.0
  %1244 = vmatprep.subr.mxu0 0.0
  %1245 = vmatpush1.msra.mxu0 0.0
  %1246 = vmatprep.subr.mxu0 0.0
  %1247 = vmatpush1.msra.mxu0 0.0
  %1248 = vmatprep.subr.mxu0 0.0
  %1249 = vmatpush1.msra.mxu0 0.0
  %1250 = vmatprep.subr.mxu0 0.0
  %1251 = vmatpush1.msra.mxu0 0.0
  %1252 = vmatprep.subr.mxu0 0.0
  %1253 = vmatpush1.msra.mxu0 0.0
  %1254 = vmatprep.subr.mxu0 0.0
  %1255 = vmatpush1.msra.mxu0 0.0
  %1256 = vmatprep.subr.mxu0 0.0
  %1257 = vmatpush1.msra.mxu0 0.0
  %1258 = vmatprep.subr.mxu0 0.0
  %1259 = vmatpush1.msra.mxu0 0.0
  %1260 = vmatprep.subr.mxu0 0.0
  %1261 = vmatpush1.msra.mxu0 0.0
  %1262 = vmatprep.subr.mxu0 0.0
  %1263 = vmatpush1.msra.mxu0 0.0
  %1264 = vmatprep.subr.mxu0 0.0
  %1265 = vmatpush1.msra.mxu0 0.0
  %1266 = vmatprep.mubr.f32.mxu0 0.0
  %1267 = vmatmul.mubr.f32.gmra.mrb[0].mxu0 %v1147
  %v1268 = vpop.f32.mrb[0].mxu0
  %v1269 = vadd.f32 %v1200, %v1268
  %v1270 = vpop.f32.mrb[0].mxu0
  %1271 = vmatprep.mubr.f32.mxu0 0.0
  %1272 = vmatmul.mubr.f32.gmra.mrb[0].mxu0 %v1148
  %v1273 = vpop.f32.mrb[0].mxu0
  %v1274 = vadd.f32 %v1200, %v1273
  %v1275 = vpop.f32.mrb[0].mxu0
  %1276 = vmatprep.mubr.f32.mxu0 0.0
  %1277 = vmatmul.mubr.f32.gmra.mrb[0].mxu0 %v1149
  %v1278 = vpop.f32.mrb[0].mxu0
  %v1279 = vadd.f32 %v1200, %v1278
  %v1280 = vpop.f32.mrb[0].mxu0
  %1281 = vmatprep.mubr.f32.mxu0 0.0
  %1282 = vmatmul.mubr.f32.gmra.mrb[0].mxu0 %v1150
  %v1283 = vpop.f32.mrb[0].mxu0
  %v1284 = vadd.f32 %v1200, %v1283
  %v1285 = vpop.f32.mrb[0].mxu0
  %1286 = vmatprep.mubr.f32.mxu0 0.0
  %1287 = vmatmul.mubr.f32.gmra.mrb[0].mxu0 %v1151
  %v1288 = vpop.f32.mrb[0].mxu0
  %v1289 = vadd.f32 %v1200, %v1288
  %v1290 = vpop.f32.mrb[0].mxu0
  %1291 = vmatprep.mubr.f32.mxu0 0.0
  %1292 = vmatmul.mubr.f32.gmra.mrb[0].mxu0 %v1152
  %v1293 = vpop.f32.mrb[0].mxu0
  %v1294 = vadd.f32 %v1200, %v1293
  %v1295 = vpop.f32.mrb[0].mxu0
  %1296 = vmatprep.mubr.f32.mxu0 0.0
  %1297 = vmatmul.mubr.f32.gmra.mrb[0].mxu0 %v1153
  %v1298 = vpop.f32.mrb[0].mxu0
  %v1299 = vadd.f32 %v1200, %v1298
  %v1300 = vpop.f32.mrb[0].mxu0
  %1301 = vmatprep.mubr.f32.mxu0 0.0
  %1302 = vmatmul.mubr.f32.gmra.mrb[0].mxu0 %v1154
  %v1303 = vpop.f32.mrb[0].mxu0
  %v1304 = vadd.f32 %v1200, %v1303
  %v1305 = vpop.f32.mrb[0].mxu0
  %1306 = vmatprep.mubr.f32.mxu0 0.0
  %1307 = vmatmul.mubr.f32.gmra.mrb[0].mxu0 %v1155
  %v1308 = vpop.f32.mrb[0].mxu0
  %v1309 = vadd.f32 %v1200, %v1308
  %v1310 = vpop.f32.mrb[0].mxu0
  %1311 = vmatprep.mubr.f32.mxu0 0.0
  %1312 = vmatmul.mubr.f32.gmra.mrb[0].mxu0 %v1156
  %v1313 = vpop.f32.mrb[0].mxu0
  %v1314 = vadd.f32 %v1200, %v1313
  %v1315 = vpop.f32.mrb[0].mxu0
  %1316 = vmatprep.mubr.f32.mxu0 0.0
  %1317 = vmatmul.mubr.f32.gmra.mrb[0].mxu0 %v1157
  %v1318 = vpop.f32.mrb[0].mxu0
  %v1319 = vadd.f32 %v1200, %v1318
  %v1320 = vpop.f32.mrb[0].mxu0
  %1321 = vmatprep.mubr.f32.mxu0 0.0
  %1322 = vmatmul.mubr.f32.gmra.mrb[0].mxu0 %v1158
  %v1323 = vpop.f32.mrb[0].mxu0
  %v1324 = vadd.f32 %v1200, %v1323
  %v1325 = vpop.f32.mrb[0].mxu0
  %1326 = vmatprep.mubr.f32.mxu0 0.0
  %1327 = vmatmul.mubr.f32.gmra.mrb[0].mxu0 %v1159
  %v1328 = vpop.f32.mrb[0].mxu0
  %v1329 = vadd.f32 %v1200, %v1328
  %v1330 = vpop.f32.mrb[0].mxu0
  %1331 = vmatprep.mubr.f32.mxu0 0.0
  %1332 = vmatmul.mubr.f32.gmra.mrb[0].mxu0 %v1160
  %v1333 = vpop.f32.mrb[0].mxu0
  %v1334 = vadd.f32 %v1200, %v1333
  %v1335 = vpop.f32.mrb[0].mxu0
  %1336 = vmatprep.mubr.f32.mxu0 0.0
  %1337 = vmatmul.mubr.f32.gmra.mrb[0].mxu0 %v1161
  %v1338 = vpop.f32.mrb[0].mxu0
  %v1339 = vadd.f32 %v1200, %v1338
  %v1340 = vpop.f32.mrb[0].mxu0
  %1341 = vmatprep.mubr.f32.mxu0 0.0
  %1342 = vmatmul.mubr.f32.gmra.mrb[0].mxu0 %v1162
  %v1343 = vpop.f32.mrb[0].mxu0
  %v1344 = vadd.f32 %v1200, %v1343
  %v1345 = vpop.f32.mrb[0].mxu0
  %1346 = vmatprep.mubr.f32.mxu0 0.0
  %1347 = vmatmul.mubr.f32.gmra.mrb[0].mxu0 %v1163
  %v1348 = vpop.f32.mrb[0].mxu0
  %v1349 = vadd.f32 %v1200, %v1348
  %v1350 = vpop.f32.mrb[0].mxu0
  %1351 = vmatprep.mubr.f32.mxu0 0.0
  %1352 = vmatmul.mubr.f32.gmra.mrb[0].mxu0 %v1164
  %v1353 = vpop.f32.mrb[0].mxu0
  %v1354 = vadd.f32 %v1200, %v1353
  %v1355 = vpop.f32.mrb[0].mxu0
  %1356 = vmatprep.mubr.f32.mxu0 0.0
  %1357 = vmatmul.mubr.f32.gmra.mrb[0].mxu0 %v1165
  %v1358 = vpop.f32.mrb[0].mxu0
  %v1359 = vadd.f32 %v1200, %v1358
  %v1360 = vpop.f32.mrb[0].mxu0
  %1361 = vmatprep.mubr.f32.mxu0 0.0
  %1362 = vmatmul.mubr.f32.gmra.mrb[0].mxu0 %v1166
  %v1363 = vpop.f32.mrb[0].mxu0
  %v1364 = vadd.f32 %v1200, %v1363
  %v1365 = vpop.f32.mrb[0].mxu0
  %1366 = vmatprep.mubr.f32.mxu0 0.0
  %1367 = vmatmul.mubr.f32.gmra.mrb[0].mxu0 %v1167
  %v1368 = vpop.f32.mrb[0].mxu0
  %v1369 = vadd.f32 %v1200, %v1368
  %v1370 = vpop.f32.mrb[0].mxu0
  %1371 = vmatprep.mubr.f32.mxu0 0.0
  %1372 = vmatmul.mubr.f32.gmra.mrb[0].mxu0 %v1168
  %v1373 = vpop.f32.mrb[0].mxu0
  %v1374 = vadd.f32 %v1200, %v1373
  %v1375 = vpop.f32.mrb[0].mxu0
  %1376 = vmatprep.mubr.f32.mxu0 0.0
  %1377 = vmatmul.mubr.f32.gmra.mrb[0].mxu0 %v1169
  %v1378 = vpop.f32.mrb[0].mxu0
  %v1379 = vadd.f32 %v1200, %v1378
  %v1380 = vpop.f32.mrb[0].mxu0
  %1381 = vmatprep.mubr.f32.mxu0 0.0
  %1382 = vmatmul.mubr.f32.gmra.mrb[0].mxu0 %v1170
  %v1383 = vpop.f32.mrb[0].mxu0
  %v1384 = vadd.f32 %v1200, %v1383
  %v1385 = vpop.f32.mrb[0].mxu0
  %1386 = vmatprep.mubr.f32.mxu0 0.0
  %1387 = vmatmul.mubr.f32.gmra.mrb[0].mxu0 %v1171
  %v1388 = vpop.f32.mrb[0].mxu0
  %v1389 = vadd.f32 %v1200, %v1388
  %v1390 = vpop.f32.mrb[0].mxu0
  %1391 = vmatprep.mubr.f32.mxu0 0.0
  %1392 = vmatmul.mubr.f32.gmra.mrb[0].mxu0 %v1172
  %v1393 = vpop.f32.mrb[0].mxu0
  %v1394 = vadd.f32 %v1200, %v1393
  %v1395 = vpop.f32.mrb[0].mxu0
  %1396 = vmatprep.mubr.f32.mxu0 0.0
  %1397 = vmatmul.mubr.f32.gmra.mrb[0].mxu0 %v1173
  %v1398 = vpop.f32.mrb[0].mxu0
  %v1399 = vadd.f32 %v1200, %v1398
  %v1400 = vpop.f32.mrb[0].mxu0
  %1401 = vmatprep.mubr.f32.mxu0 0.0
  %1402 = vmatmul.mubr.f32.gmra.mrb[0].mxu0 %v1174
  %v1403 = vpop.f32.mrb[0].mxu0
  %v1404 = vadd.f32 %v1200, %v1403
  %v1405 = vpop.f32.mrb[0].mxu0
  %1406 = vmatprep.mubr.f32.mxu0 0.0
  %1407 = vmatmul.mubr.f32.gmra.mrb[0].mxu0 %v1175
  %v1408 = vpop.f32.mrb[0].mxu0
  %v1409 = vadd.f32 %v1200, %v1408
  %v1410 = vpop.f32.mrb[0].mxu0
  %1411 = vmatprep.mubr.f32.mxu0 0.0
  %1412 = vmatmul.mubr.f32.gmra.mrb[0].mxu0 %v1176
  %v1413 = vpop.f32.mrb[0].mxu0
  %v1414 = vadd.f32 %v1200, %v1413
  %v1415 = vpop.f32.mrb[0].mxu0
  %1416 = vmatprep.mubr.f32.mxu0 0.0
  %1417 = vmatmul.mubr.f32.gmra.mrb[0].mxu0 %v1177
  %v1418 = vpop.f32.mrb[0].mxu0
  %v1419 = vadd.f32 %v1200, %v1418
  %v1420 = vpop.f32.mrb[0].mxu0
  %1421 = vmatprep.mubr.f32.mxu0 0.0
  %1422 = vmatmul.mubr.f32.gmra.mrb[0].mxu0 %v1178
  %v1423 = vpop.f32.mrb[0].mxu0
  %v1424 = vadd.f32 %v1200, %v1423
  %v1425 = vpop.f32.mrb[0].mxu0
  %1426 = vdwg.mxu0
  %v1427 = vmax.f32 %v1269, 0.0
  %v1428 = vmax.f32 %v1274, 0.0
  %v1429 = vmax.f32 %v1279, 0.0
  %v1430 = vmax.f32 %v1284, 0.0
  %v1431 = vmax.f32 %v1289, 0.0
  %v1432 = vmax.f32 %v1294, 0.0
  %v1433 = vmax.f32 %v1299, 0.0
  %v1434 = vmax.f32 %v1304, 0.0
  %v1435 = vmax.f32 %v1309, 0.0
  %v1436 = vmax.f32 %v1314, 0.0
  %v1437 = vmax.f32 %v1319, 0.0
  %v1438 = vmax.f32 %v1324, 0.0
  %v1439 = vmax.f32 %v1329, 0.0
  %v1440 = vmax.f32 %v1334, 0.0
  %v1441 = vmax.f32 %v1339, 0.0
  %v1442 = vmax.f32 %v1344, 0.0
  %v1443 = vmax.f32 %v1349, 0.0
  %v1444 = vmax.f32 %v1354, 0.0
  %v1445 = vmax.f32 %v1359, 0.0
  %v1446 = vmax.f32 %v1364, 0.0
  %v1447 = vmax.f32 %v1369, 0.0
  %v1448 = vmax.f32 %v1374, 0.0
  %v1449 = vmax.f32 %v1379, 0.0
  %v1450 = vmax.f32 %v1384, 0.0
  %v1451 = vmax.f32 %v1389, 0.0
  %v1452 = vmax.f32 %v1394, 0.0
  %v1453 = vmax.f32 %v1399, 0.0
  %v1454 = vmax.f32 %v1404, 0.0
  %v1455 = vmax.f32 %v1409, 0.0
  %v1456 = vmax.f32 %v1414, 0.0
  %v1457 = vmax.f32 %v1419, 0.0
  %v1458 = vmax.f32 %v1424, 0.0
  %v1459 = vld [vmem:[%s6] sm:$0x1]
  %v1461 = vlaneseq
  %v1462 = vshrl.u32 %v1461, 7
  %v1463 = vsub.s32 0, %v1462
  %v1464 = vrot.slane %v1459, %v1463
  %v1466 = vmul.f32 %v1427, %v1464
  %v1467 = vmul.f32 %v1428, %v1464
  %v1468 = vmul.f32 %v1429, %v1464
  %v1469 = vmul.f32 %v1430, %v1464
  %v1470 = vmul.f32 %v1431, %v1464
  %v1471 = vmul.f32 %v1432, %v1464
  %v1472 = vmul.f32 %v1433, %v1464
  %v1473 = vmul.f32 %v1434, %v1464
  %v1474 = vmul.f32 %v1435, %v1464
  %v1475 = vmul.f32 %v1436, %v1464
  %v1476 = vmul.f32 %v1437, %v1464
  %v1477 = vmul.f32 %v1438, %v1464
  %v1478 = vmul.f32 %v1439, %v1464
  %v1479 = vmul.f32 %v1440, %v1464
  %v1480 = vmul.f32 %v1441, %v1464
  %v1481 = vmul.f32 %v1442, %v1464
  %v1482 = vmul.f32 %v1443, %v1464
  %v1483 = vmul.f32 %v1444, %v1464
  %v1484 = vmul.f32 %v1445, %v1464
  %v1485 = vmul.f32 %v1446, %v1464
  %v1486 = vmul.f32 %v1447, %v1464
  %v1487 = vmul.f32 %v1448, %v1464
  %v1488 = vmul.f32 %v1449, %v1464
  %v1489 = vmul.f32 %v1450, %v1464
  %v1490 = vmul.f32 %v1451, %v1464
  %v1491 = vmul.f32 %v1452, %v1464
  %v1492 = vmul.f32 %v1453, %v1464
  %v1493 = vmul.f32 %v1454, %v1464
  %v1494 = vmul.f32 %v1455, %v1464
  %v1495 = vmul.f32 %v1456, %v1464
  %v1496 = vmul.f32 %v1457, %v1464
  %v1497 = vmul.f32 %v1458, %v1464
  %vm1498 = vcmask 523264
  %v1499 = vsel %vm1498, %v1466, 0.0
  %1500 = vadd.xlane.f32.xlu0 %v1499
  %v1501 = vpop.xlane.xlu0 %1500
  %v1502 = vsel %vm1498, %v1467, 0.0
  %1503 = vadd.xlane.f32.xlu0 %v1502
  %v1504 = vpop.xlane.xlu0 %1503
  %v1505 = vsel %vm1498, %v1468, 0.0
  %1506 = vadd.xlane.f32.xlu0 %v1505
  %v1507 = vpop.xlane.xlu0 %1506
  %v1508 = vsel %vm1498, %v1469, 0.0
  %1509 = vadd.xlane.f32.xlu0 %v1508
  %v1510 = vpop.xlane.xlu0 %1509
  %v1511 = vsel %vm1498, %v1470, 0.0
  %1512 = vadd.xlane.f32.xlu0 %v1511
  %v1513 = vpop.xlane.xlu0 %1512
  %v1514 = vsel %vm1498, %v1471, 0.0
  %1515 = vadd.xlane.f32.xlu0 %v1514
  %v1516 = vpop.xlane.xlu0 %1515
  %v1517 = vsel %vm1498, %v1472, 0.0
  %1518 = vadd.xlane.f32.xlu0 %v1517
  %v1519 = vpop.xlane.xlu0 %1518
  %v1520 = vsel %vm1498, %v1473, 0.0
  %1521 = vadd.xlane.f32.xlu0 %v1520
  %v1522 = vpop.xlane.xlu0 %1521
  %v1523 = vsel %vm1498, %v1474, 0.0
  %1524 = vadd.xlane.f32.xlu0 %v1523
  %v1525 = vpop.xlane.xlu0 %1524
  %v1526 = vsel %vm1498, %v1475, 0.0
  %1527 = vadd.xlane.f32.xlu0 %v1526
  %v1528 = vpop.xlane.xlu0 %1527
  %v1529 = vsel %vm1498, %v1476, 0.0
  %1530 = vadd.xlane.f32.xlu0 %v1529
  %v1531 = vpop.xlane.xlu0 %1530
  %v1532 = vsel %vm1498, %v1477, 0.0
  %1533 = vadd.xlane.f32.xlu0 %v1532
  %v1534 = vpop.xlane.xlu0 %1533
  %v1535 = vsel %vm1498, %v1478, 0.0
  %1536 = vadd.xlane.f32.xlu0 %v1535
  %v1537 = vpop.xlane.xlu0 %1536
  %v1538 = vsel %vm1498, %v1479, 0.0
  %1539 = vadd.xlane.f32.xlu0 %v1538
  %v1540 = vpop.xlane.xlu0 %1539
  %v1541 = vsel %vm1498, %v1480, 0.0
  %1542 = vadd.xlane.f32.xlu0 %v1541
  %v1543 = vpop.xlane.xlu0 %1542
  %v1544 = vsel %vm1498, %v1481, 0.0
  %1545 = vadd.xlane.f32.xlu0 %v1544
  %v1546 = vpop.xlane.xlu0 %1545
  %v1547 = vsel %vm1498, %v1482, 0.0
  %1548 = vadd.xlane.f32.xlu0 %v1547
  %v1549 = vpop.xlane.xlu0 %1548
  %v1550 = vsel %vm1498, %v1483, 0.0
  %1551 = vadd.xlane.f32.xlu0 %v1550
  %v1552 = vpop.xlane.xlu0 %1551
  %v1553 = vsel %vm1498, %v1484, 0.0
  %1554 = vadd.xlane.f32.xlu0 %v1553
  %v1555 = vpop.xlane.xlu0 %1554
  %v1556 = vsel %vm1498, %v1485, 0.0
  %1557 = vadd.xlane.f32.xlu0 %v1556
  %v1558 = vpop.xlane.xlu0 %1557
  %v1559 = vsel %vm1498, %v1486, 0.0
  %1560 = vadd.xlane.f32.xlu0 %v1559
  %v1561 = vpop.xlane.xlu0 %1560
  %v1562 = vsel %vm1498, %v1487, 0.0
  %1563 = vadd.xlane.f32.xlu0 %v1562
  %v1564 = vpop.xlane.xlu0 %1563
  %v1565 = vsel %vm1498, %v1488, 0.0
  %1566 = vadd.xlane.f32.xlu0 %v1565
  %v1567 = vpop.xlane.xlu0 %1566
  %v1568 = vsel %vm1498, %v1489, 0.0
  %1569 = vadd.xlane.f32.xlu0 %v1568
  %v1570 = vpop.xlane.xlu0 %1569
  %v1571 = vsel %vm1498, %v1490, 0.0
  %1572 = vadd.xlane.f32.xlu0 %v1571
  %v1573 = vpop.xlane.xlu0 %1572
  %v1574 = vsel %vm1498, %v1491, 0.0
  %1575 = vadd.xlane.f32.xlu0 %v1574
  %v1576 = vpop.xlane.xlu0 %1575
  %v1577 = vsel %vm1498, %v1492, 0.0
  %1578 = vadd.xlane.f32.xlu0 %v1577
  %v1579 = vpop.xlane.xlu0 %1578
  %v1580 = vsel %vm1498, %v1493, 0.0
  %1581 = vadd.xlane.f32.xlu0 %v1580
  %v1582 = vpop.xlane.xlu0 %1581
  %v1583 = vsel %vm1498, %v1494, 0.0
  %1584 = vadd.xlane.f32.xlu0 %v1583
  %v1585 = vpop.xlane.xlu0 %1584
  %v1586 = vsel %vm1498, %v1495, 0.0
  %1587 = vadd.xlane.f32.xlu0 %v1586
  %v1588 = vpop.xlane.xlu0 %1587
  %v1589 = vsel %vm1498, %v1496, 0.0
  %1590 = vadd.xlane.f32.xlu0 %v1589
  %v1591 = vpop.xlane.xlu0 %1590
  %v1592 = vsel %vm1498, %v1497, 0.0
  %1593 = vadd.xlane.f32.xlu0 %v1592
  %v1594 = vpop.xlane.xlu0 %1593
  %v1595 = vld [vmem:[#allocation2] sm:$0x1]
  %v1597 = vlaneseq
  %v1598 = vshrl.u32 %v1597, 7
  %v1599 = vsub.s32 0, %v1598
  %v1600 = vrot.slane %v1595, %v1599
  %v1602 = vadd.f32 %v1501, %v1600
  %v1603 = vadd.f32 %v1504, %v1600
  %v1604 = vadd.f32 %v1507, %v1600
  %v1605 = vadd.f32 %v1510, %v1600
  %v1606 = vadd.f32 %v1513, %v1600
  %v1607 = vadd.f32 %v1516, %v1600
  %v1608 = vadd.f32 %v1519, %v1600
  %v1609 = vadd.f32 %v1522, %v1600
  %v1610 = vadd.f32 %v1525, %v1600
  %v1611 = vadd.f32 %v1528, %v1600
  %v1612 = vadd.f32 %v1531, %v1600
  %v1613 = vadd.f32 %v1534, %v1600
  %v1614 = vadd.f32 %v1537, %v1600
  %v1615 = vadd.f32 %v1540, %v1600
  %v1616 = vadd.f32 %v1543, %v1600
  %v1617 = vadd.f32 %v1546, %v1600
  %v1618 = vadd.f32 %v1549, %v1600
  %v1619 = vadd.f32 %v1552, %v1600
  %v1620 = vadd.f32 %v1555, %v1600
  %v1621 = vadd.f32 %v1558, %v1600
  %v1622 = vadd.f32 %v1561, %v1600
  %v1623 = vadd.f32 %v1564, %v1600
  %v1624 = vadd.f32 %v1567, %v1600
  %v1625 = vadd.f32 %v1570, %v1600
  %v1626 = vadd.f32 %v1573, %v1600
  %v1627 = vadd.f32 %v1576, %v1600
  %v1628 = vadd.f32 %v1579, %v1600
  %v1629 = vadd.f32 %v1582, %v1600
  %v1630 = vadd.f32 %v1585, %v1600
  %v1631 = vadd.f32 %v1588, %v1600
  %v1632 = vadd.f32 %v1591, %v1600
  %v1633 = vadd.f32 %v1594, %v1600
  %vm1634 = vcmask 7168
  %1635 = vst.msk [vmem:[%s8] sm:$0xff] %vm1634, %v1602
  %1636 = vst.msk [vmem:[%s8 + $0x8] sm:$0xff] %vm1634, %v1603
  %1637 = vst.msk [vmem:[%s8 + $0x10] sm:$0xff] %vm1634, %v1604
  %1638 = vst.msk [vmem:[%s8 + $0x18] sm:$0xff] %vm1634, %v1605
  %1639 = vst.msk [vmem:[%s8 + $0x20] sm:$0xff] %vm1634, %v1606
  %1640 = vst.msk [vmem:[%s8 + $0x28] sm:$0xff] %vm1634, %v1607
  %1641 = vst.msk [vmem:[%s8 + $0x30] sm:$0xff] %vm1634, %v1608
  %1642 = vst.msk [vmem:[%s8 + $0x38] sm:$0xff] %vm1634, %v1609
  %1643 = vst.msk [vmem:[%s8 + $0x40] sm:$0xff] %vm1634, %v1610
  %1644 = vst.msk [vmem:[%s8 + $0x48] sm:$0xff] %vm1634, %v1611
  %1645 = vst.msk [vmem:[%s8 + $0x50] sm:$0xff] %vm1634, %v1612
  %1646 = vst.msk [vmem:[%s8 + $0x58] sm:$0xff] %vm1634, %v1613
  %1647 = vst.msk [vmem:[%s8 + $0x60] sm:$0xff] %vm1634, %v1614
  %1648 = vst.msk [vmem:[%s8 + $0x68] sm:$0xff] %vm1634, %v1615
  %1649 = vst.msk [vmem:[%s8 + $0x70] sm:$0xff] %vm1634, %v1616
  %1650 = vst.msk [vmem:[%s8 + $0x78] sm:$0xff] %vm1634, %v1617
  %1651 = vst.msk [vmem:[%s8 + $0x80] sm:$0xff] %vm1634, %v1618
  %1652 = vst.msk [vmem:[%s8 + $0x88] sm:$0xff] %vm1634, %v1619
  %1653 = vst.msk [vmem:[%s8 + $0x90] sm:$0xff] %vm1634, %v1620
  %1654 = vst.msk [vmem:[%s8 + $0x98] sm:$0xff] %vm1634, %v1621
  %1655 = vst.msk [vmem:[%s8 + $0xa0] sm:$0xff] %vm1634, %v1622
  %1656 = vst.msk [vmem:[%s8 + $0xa8] sm:$0xff] %vm1634, %v1623
  %1657 = vst.msk [vmem:[%s8 + $0xb0] sm:$0xff] %vm1634, %v1624
  %1658 = vst.msk [vmem:[%s8 + $0xb8] sm:$0xff] %vm1634, %v1625
  %1659 = vst.msk [vmem:[%s8 + $0xc0] sm:$0xff] %vm1634, %v1626
  %1660 = vst.msk [vmem:[%s8 + $0xc8] sm:$0xff] %vm1634, %v1627
  %1661 = vst.msk [vmem:[%s8 + $0xd0] sm:$0xff] %vm1634, %v1628
  %1662 = vst.msk [vmem:[%s8 + $0xd8] sm:$0xff] %vm1634, %v1629
  %1663 = vst.msk [vmem:[%s8 + $0xe0] sm:$0xff] %vm1634, %v1630
  %1664 = vst.msk [vmem:[%s8 + $0xe8] sm:$0xff] %vm1634, %v1631
  %1665 = vst.msk [vmem:[%s8 + $0xf0] sm:$0xff] %vm1634, %v1632
  %1666 = vst.msk [vmem:[%s8 + $0xf8] sm:$0xff] %vm1634, %v1633
  // Predicated region
  $region34: #{value_func_forward.1} parent=0 // pred_check
    _
  $region35: #{value_func_forward.1} parent=0 // pred_check_branch
    %1668 = sbr.rel (0) target = $region37
  $region36: #{value_func_forward.1} parent=0 // pred_region
    _
  $region37: #{value_func_forward.1} parent=0 // pred_fallthru
    _
  // Predicated region
  $region38: #{value_func_forward.1} parent=0 // pred_check
    _
  $region39: #{value_func_forward.1} parent=0 // pred_check_branch
    %1670 = sbr.rel (0) target = $region41
  $region40: #{value_func_forward.1} parent=0 // pred_region
    _
  $region41: #{value_func_forward.1} parent=0 // pred_fallthru
    _

</llo_original>
